<compile_context>
chip_gen: v5e
topology: v5e:2x2
jax: 0.10.0
libtpu: 0.0.40
codegen_flags: <defaults>
</compile_context>

<pallas_src>
import jax
import jax.numpy as jnp
from jax.experimental import pallas as pl
from jax.experimental.pallas import tpu as pltpu

BN_EPS = 1e-5
BN_SCALE = (1.0 + BN_EPS) ** -0.5    # gamma / sqrt(var + eps) with default stats
TCN_K = 2                            # TemporalConvNet default kernel_size


def _round8(n):
    return -(-n // 8) * 8


# ----------------------------------------------------------------------------
# Fused forward kernel: the whole network for one batch element per grid step.
# ----------------------------------------------------------------------------
def _pssp_kernel(x_ref,
                 w_sc0, w_sc1,                                # stem.conv
                 w_b1a, w_b1b,                                # stem.branch_1
                 w_b2a,                                       # stem.branch_2[0]
                 t0_w1, t0_b1, t0_w2, t0_b2, t0_wd, t0_bd,    # TCN level 0
                 t1_w1, t1_b1, t1_w2, t1_b2, t1_wd, t1_bd,    # TCN level 1
                 w_b2c,                                       # stem.branch_2[2]
                 w_head, w_fc,                                # pssp_repr.conv / .fc
                 o_ref,
                 stack_ref):
    x = x_ref[0]                                   # (C, L)
    C, L = x.shape
    half = C // 2

    def conv(v, w_ref, K, dilation=1, pad_l=0, pad_r=0):
        """PyTorch Conv1d (cross-correlation) as a single MXU matmul."""
        if K == 1 and pad_l == 0 and pad_r == 0:   # plain 1x1 conv / Linear
            return jnp.dot(w_ref[...], v, preferred_element_type=jnp.float32)
        C_in, L_in = v.shape
        Cp = _round8(C_in)                         # 8-aligned row pitch per tap
        L_out = L_in + pad_l + pad_r - (K - 1) * dilation
        rows = K * Cp
        # Zero the im2col region (covers the conv padding and the zero-weight
        # channel-pad rows), then copy each tap's valid shifted window.
        stack_ref[0:rows, 0:L_out] = jnp.zeros((rows, L_out), jnp.float32)
        for k in range(K):                         # static unroll: VMEM copies
            off = k * dilation - pad_l
            t0 = max(0, -off)
            t1 = min(L_out, L_in - off)
            stack_ref[k * Cp:k * Cp + C_in, t0:t1] = v[:, t0 + off:t1 + off]
        return jnp.dot(w_ref[...], stack_ref[0:rows, 0:L_out],
                       preferred_element_type=jnp.float32)

    def basic(v, w_ref, K):
        """BasicConv1d: conv('same', no bias) + BN(eval, default stats) + ReLU."""
        # TODO(synk): with a trained checkpoint, fold real BN running stats /
        # affine params instead of the default-stats constant BN_SCALE.
        return jnp.maximum(conv(v, w_ref, K, 1, K // 2, K // 2) * BN_SCALE, 0.0)

    def tblock(v, w1, b1, w2, b2, wd, bd, dilation):
        """TCN TemporalBlock: two causal dilated convs + 1x1 residual + ReLU."""
        pad = (TCN_K - 1) * dilation               # left-pad only (chomp folded)
        y = jnp.maximum(conv(v, w1, TCN_K, dilation, pad, 0) + b1[...], 0.0)
        y = jnp.maximum(conv(y, w2, TCN_K, dilation, pad, 0) + b2[...], 0.0)
        res = jnp.dot(wd[...], v, preferred_element_type=jnp.float32) + bd[...]
        return jnp.maximum(y + res, 0.0)

    # ---- stem ---------------------------------------------------------------
    # TODO(synk): all nn.Dropout layers are eval-mode identity here.
    out = basic(x, w_sc0, 1)
    out = basic(out, w_sc1, 3)

    x1 = basic(out, w_b1a, 3)
    x1 = basic(x1, w_b1b, 3)

    x2 = basic(out, w_b2a, 1)
    x2 = tblock(x2, t0_w1, t0_b1, t0_w2, t0_b2, t0_wd, t0_bd, dilation=1)
    x2 = tblock(x2, t1_w1, t1_b1, t1_w2, t1_b2, t1_wd, t1_bd, dilation=2)
    x2 = basic(x2, w_b2c, 1)

    # torch.cat([x1, x2], dim=1) via the VMEM scratch (no HBM round-trip),
    # fused with bn1 + hardswish + residual add.
    stack_ref[0:half, 0:L] = x1
    stack_ref[half:C, 0:L] = x2
    y = stack_ref[0:C, 0:L] * BN_SCALE                    # bn1 (eval, default)
    y = y * jnp.clip(y + 3.0, 0.0, 6.0) * (1.0 / 6.0)     # hardswish
    y = y + x                                             # += identity

    # ---- head ---------------------------------------------------------------
    y = basic(y, w_head, 9)                               # (96, L)
    # fc over channels (Linear 96->32, no bias) == 1x1 conv; transposes fold away.
    o_ref[0] = jnp.dot(w_fc[...], y, preferred_element_type=jnp.float32)


# ----------------------------------------------------------------------------
# Wrapper: weight re-layout + single pallas_call
# ----------------------------------------------------------------------------
def _flatten_conv_weight(w):
    """(C_out, C_in, K) -> (C_out, K*Cp): K folded into the contracting dim (so
    K never lands on the lane axis) and C_in zero-padded to a multiple of 8 so
    every im2col tap sits at an 8-aligned sublane offset in the scratch."""
    c_out, c_in, k = w.shape
    if k == 1:
        return w.reshape(c_out, c_in).astype(jnp.float32)
    cp = _round8(c_in)
    wt = jnp.transpose(w, (0, 2, 1))                      # (C_out, K, C_in)
    wt = jnp.pad(wt, ((0, 0), (0, 0), (0, cp - c_in)))    # zero-pad channels
    return wt.reshape(c_out, k * cp).astype(jnp.float32)


def _col(b):
    return b.reshape(b.shape[0], 1).astype(jnp.float32)


@jax.jit
def pssp_repr_forward(x, p):
    """x: (N, C, L) float32 -> (N, 32, L) float32, whole net in one kernel."""
    N, C, L = x.shape
    wf = _flatten_conv_weight

    args = [
        x.astype(jnp.float32),
        wf(p["stem_conv0_w"]), wf(p["stem_conv1_w"]),
        wf(p["b1_0_w"]), wf(p["b1_1_w"]),
        wf(p["b2_0_w"]),
        wf(p["tcn0_w1"]), _col(p["tcn0_b1"]),
        wf(p["tcn0_w2"]), _col(p["tcn0_b2"]),
        wf(p["tcn0_wd"]), _col(p["tcn0_bd"]),
        wf(p["tcn1_w1"]), _col(p["tcn1_b1"]),
        wf(p["tcn1_w2"]), _col(p["tcn1_b2"]),
        wf(p["tcn1_wd"]), _col(p["tcn1_bd"]),
        wf(p["b2_2_w"]),
        wf(p["conv_w"]),
        p["fc_w"].astype(jnp.float32),
    ]

    in_specs = [pl.BlockSpec((1, C, L), lambda n: (n, 0, 0))]
    in_specs += [pl.BlockSpec(a.shape, lambda n: (0, 0)) for a in args[1:]]

    # im2col scratch: rows = max K*Cp over all convs (head conv: 9 taps * C).
    stack_rows = 9 * _round8(C)

    return pl.pallas_call(
        _pssp_kernel,
        out_shape=jax.ShapeDtypeStruct((N, 32, L), jnp.float32),
        grid=(N,),
        in_specs=in_specs,
        out_specs=pl.BlockSpec((1, 32, L), lambda n: (n, 0, 0)),
        scratch_shapes=[pltpu.VMEM((stack_rows, L), jnp.float32)],
        compiler_params=pltpu.CompilerParams(
            dimension_semantics=("parallel",),   # v7x: batch splits across 2 TCs
        ),
    )(*args)


# ----------------------------------------------------------------------------
# Deterministic parameter init (shapes follow the PyTorch module __init__)
# ----------------------------------------------------------------------------
def init_params(key, C):
    C2, C4, C8 = C // 2, C // 4, C // 8
    keys = iter(jax.random.split(key, 20))
    nrm = lambda shape: 0.1 * jax.random.normal(next(keys), shape, jnp.float32)
    p = {}
    # stem.conv
    p["stem_conv0_w"] = nrm((C, C, 1))
    p["stem_conv1_w"] = nrm((C, C, 3))
    # stem.branch_1
    p["b1_0_w"] = nrm((C2, C, 3))
    p["b1_1_w"] = nrm((C2, C2, 3))
    # stem.branch_2
    p["b2_0_w"] = nrm((C2, C, 1))
    p["tcn0_w1"] = nrm((C4, C2, TCN_K)); p["tcn0_b1"] = nrm((C4,))
    p["tcn0_w2"] = nrm((C4, C4, TCN_K)); p["tcn0_b2"] = nrm((C4,))
    p["tcn0_wd"] = nrm((C4, C2, 1));     p["tcn0_bd"] = nrm((C4,))
    p["tcn1_w1"] = nrm((C8, C4, TCN_K)); p["tcn1_b1"] = nrm((C8,))
    p["tcn1_w2"] = nrm((C8, C8, TCN_K)); p["tcn1_b2"] = nrm((C8,))
    p["tcn1_wd"] = nrm((C8, C4, 1));     p["tcn1_bd"] = nrm((C8,))
    p["b2_2_w"] = nrm((C2, C8, 1))
    # head
    p["conv_w"] = nrm((96, C, 9))
    p["fc_w"] = nrm((32, 96))
    return p


if __name__ == "__main__":
    N, C, L = 2, 16, 16   # batch=2, num_channels=16, sequence length=16
    key = jax.random.PRNGKey(0)
    k_x, k_p = jax.random.split(key)
    x = jax.random.normal(k_x, (N, C, L), jnp.float32)
    params = init_params(k_p, C)

    out = pssp_repr_forward(x, params)
    out = jax.block_until_ready(out)
    assert out.shape == (N, 32, L), out.shape
    assert out.dtype == jnp.float32
    print("KERNEL_OK")
</pallas_src>

<mosaic_0001>
module attributes {stable_mosaic.version = 11 : i64} {
  func.func @_pssp_kernel(%arg0: i32, %arg1: memref<1x16x16xf32, #tpu.memory_space<vmem>>, %arg2: memref<16x16xf32, #tpu.memory_space<vmem>>, %arg3: memref<16x48xf32, #tpu.memory_space<vmem>>, %arg4: memref<8x48xf32, #tpu.memory_space<vmem>>, %arg5: memref<8x24xf32, #tpu.memory_space<vmem>>, %arg6: memref<8x16xf32, #tpu.memory_space<vmem>>, %arg7: memref<4x16xf32, #tpu.memory_space<vmem>>, %arg8: memref<4x1xf32, #tpu.memory_space<vmem>>, %arg9: memref<4x16xf32, #tpu.memory_space<vmem>>, %arg10: memref<4x1xf32, #tpu.memory_space<vmem>>, %arg11: memref<4x8xf32, #tpu.memory_space<vmem>>, %arg12: memref<4x1xf32, #tpu.memory_space<vmem>>, %arg13: memref<2x16xf32, #tpu.memory_space<vmem>>, %arg14: memref<2x1xf32, #tpu.memory_space<vmem>>, %arg15: memref<2x16xf32, #tpu.memory_space<vmem>>, %arg16: memref<2x1xf32, #tpu.memory_space<vmem>>, %arg17: memref<2x4xf32, #tpu.memory_space<vmem>>, %arg18: memref<2x1xf32, #tpu.memory_space<vmem>>, %arg19: memref<8x2xf32, #tpu.memory_space<vmem>>, %arg20: memref<96x144xf32, #tpu.memory_space<vmem>>, %arg21: memref<32x96xf32, #tpu.memory_space<vmem>>, %arg22: memref<1x32x16xf32, #tpu.memory_space<vmem>>, %arg23: memref<144x16xf32, #tpu.memory_space<vmem>>) attributes {dimension_semantics = [#tpu.dimension_semantics<parallel>], iteration_bounds = array<i64: 2>, scalar_prefetch = 0 : i64, scratch_operands = 1 : i64, tpu.core_type = #tpu.core_type<tc>, window_params = [{transform_indices = @transform_0, window_bounds = array<i64: 1, 16, 16>}, {pipeline_mode = #tpu.pipeline_mode<synchronous>, transform_indices = @transform_1, window_bounds = array<i64: 16, 16>}, {pipeline_mode = #tpu.pipeline_mode<synchronous>, transform_indices = @transform_2, window_bounds = array<i64: 16, 48>}, {pipeline_mode = #tpu.pipeline_mode<synchronous>, transform_indices = @transform_3, window_bounds = array<i64: 8, 48>}, {pipeline_mode = #tpu.pipeline_mode<synchronous>, transform_indices = @transform_4, window_bounds = array<i64: 8, 24>}, {pipeline_mode = #tpu.pipeline_mode<synchronous>, transform_indices = @transform_5, window_bounds = array<i64: 8, 16>}, {pipeline_mode = #tpu.pipeline_mode<synchronous>, transform_indices = @transform_6, window_bounds = array<i64: 4, 16>}, {pipeline_mode = #tpu.pipeline_mode<synchronous>, transform_indices = @transform_7, window_bounds = array<i64: 4, 1>}, {pipeline_mode = #tpu.pipeline_mode<synchronous>, transform_indices = @transform_8, window_bounds = array<i64: 4, 16>}, {pipeline_mode = #tpu.pipeline_mode<synchronous>, transform_indices = @transform_9, window_bounds = array<i64: 4, 1>}, {pipeline_mode = #tpu.pipeline_mode<synchronous>, transform_indices = @transform_10, window_bounds = array<i64: 4, 8>}, {pipeline_mode = #tpu.pipeline_mode<synchronous>, transform_indices = @transform_11, window_bounds = array<i64: 4, 1>}, {pipeline_mode = #tpu.pipeline_mode<synchronous>, transform_indices = @transform_12, window_bounds = array<i64: 2, 16>}, {pipeline_mode = #tpu.pipeline_mode<synchronous>, transform_indices = @transform_13, window_bounds = array<i64: 2, 1>}, {pipeline_mode = #tpu.pipeline_mode<synchronous>, transform_indices = @transform_14, window_bounds = array<i64: 2, 16>}, {pipeline_mode = #tpu.pipeline_mode<synchronous>, transform_indices = @transform_15, window_bounds = array<i64: 2, 1>}, {pipeline_mode = #tpu.pipeline_mode<synchronous>, transform_indices = @transform_16, window_bounds = array<i64: 2, 4>}, {pipeline_mode = #tpu.pipeline_mode<synchronous>, transform_indices = @transform_17, window_bounds = array<i64: 2, 1>}, {pipeline_mode = #tpu.pipeline_mode<synchronous>, transform_indices = @transform_18, window_bounds = array<i64: 8, 2>}, {pipeline_mode = #tpu.pipeline_mode<synchronous>, transform_indices = @transform_19, window_bounds = array<i64: 96, 144>}, {pipeline_mode = #tpu.pipeline_mode<synchronous>, transform_indices = @transform_20, window_bounds = array<i64: 32, 96>}, {transform_indices = @transform_21, window_bounds = array<i64: 1, 32, 16>}]} {
    %c0 = arith.constant 0 : index
    %c0_0 = arith.constant 0 : index
    %c0_1 = arith.constant 0 : index
    %0 = vector.load %arg1[%c0, %c0_0, %c0_1] : memref<1x16x16xf32, #tpu.memory_space<vmem>>, vector<1x16x16xf32>
    %1 = vector.shape_cast %0 : vector<1x16x16xf32> to vector<16x16xf32>
    %c0_2 = arith.constant 0 : index
    %c0_3 = arith.constant 0 : index
    %2 = vector.load %arg2[%c0_2, %c0_3] : memref<16x16xf32, #tpu.memory_space<vmem>>, vector<16x16xf32>
    %cst = arith.constant dense<0.000000e+00> : vector<16x16xf32>
    %3 = tpu.matmul %2, %1, %cst {dimension_numbers = #tpu.dot_dimension_numbers<[1], [0], [0], [1], [0, 0, 1, 1], [], []>} : vector<16x16xf32>, vector<16x16xf32>, vector<16x16xf32> -> vector<16x16xf32>
    %cst_4 = arith.constant 0.999994993 : f32
    %4 = vector.broadcast %cst_4 : f32 to vector<16x16xf32>
    %5 = arith.mulf %3, %4 : vector<16x16xf32>
    %cst_5 = arith.constant 0.000000e+00 : f32
    %6 = vector.broadcast %cst_5 : f32 to vector<16x16xf32>
    %7 = arith.maximumf %5, %6 : vector<16x16xf32>
    %cst_6 = arith.constant 0.000000e+00 : f32
    %8 = vector.broadcast %cst_6 : f32 to vector<48x16xf32>
    %c0_7 = arith.constant 0 : index
    %c0_8 = arith.constant 0 : index
    %9 = vector.load %arg23[%c0_7, %c0_8] : memref<144x16xf32, #tpu.memory_space<vmem>>, vector<48x16xf32>
    tpu.vector_store %arg23[%c0_7, %c0_8], %8 {strides = array<i32>} : memref<144x16xf32, #tpu.memory_space<vmem>>, vector<48x16xf32>,
    %10 = vector.extract_strided_slice %7 {offsets = [0, 0], sizes = [16, 15], strides = [1, 1]} : vector<16x16xf32> to vector<16x15xf32>
    %c0_9 = arith.constant 0 : index
    %c1 = arith.constant 1 : index
    %11 = vector.load %arg23[%c0_9, %c1] : memref<144x16xf32, #tpu.memory_space<vmem>>, vector<16x15xf32>
    tpu.vector_store %arg23[%c0_9, %c1], %10 {strides = array<i32>} : memref<144x16xf32, #tpu.memory_space<vmem>>, vector<16x15xf32>,
    %c16 = arith.constant 16 : index
    %c0_10 = arith.constant 0 : index
    %12 = vector.load %arg23[%c16, %c0_10] : memref<144x16xf32, #tpu.memory_space<vmem>>, vector<16x16xf32>
    tpu.vector_store %arg23[%c16, %c0_10], %7 {strides = array<i32>} : memref<144x16xf32, #tpu.memory_space<vmem>>, vector<16x16xf32>,
    %13 = vector.extract_strided_slice %7 {offsets = [0, 1], sizes = [16, 15], strides = [1, 1]} : vector<16x16xf32> to vector<16x15xf32>
    %c32 = arith.constant 32 : index
    %c0_11 = arith.constant 0 : index
    %14 = vector.load %arg23[%c32, %c0_11] : memref<144x16xf32, #tpu.memory_space<vmem>>, vector<16x15xf32>
    tpu.vector_store %arg23[%c32, %c0_11], %13 {strides = array<i32>} : memref<144x16xf32, #tpu.memory_space<vmem>>, vector<16x15xf32>,
    %c0_12 = arith.constant 0 : index
    %c0_13 = arith.constant 0 : index
    %15 = vector.load %arg3[%c0_12, %c0_13] : memref<16x48xf32, #tpu.memory_space<vmem>>, vector<16x48xf32>
    %c0_14 = arith.constant 0 : index
    %c0_15 = arith.constant 0 : index
    %16 = vector.load %arg23[%c0_14, %c0_15] : memref<144x16xf32, #tpu.memory_space<vmem>>, vector<48x16xf32>
    %cst_16 = arith.constant dense<0.000000e+00> : vector<16x16xf32>
    %17 = tpu.matmul %15, %16, %cst_16 {dimension_numbers = #tpu.dot_dimension_numbers<[1], [0], [0], [1], [0, 0, 1, 1], [], []>} : vector<16x48xf32>, vector<48x16xf32>, vector<16x16xf32> -> vector<16x16xf32>
    %cst_17 = arith.constant 0.999994993 : f32
    %18 = vector.broadcast %cst_17 : f32 to vector<16x16xf32>
    %19 = arith.mulf %17, %18 : vector<16x16xf32>
    %cst_18 = arith.constant 0.000000e+00 : f32
    %20 = vector.broadcast %cst_18 : f32 to vector<16x16xf32>
    %21 = arith.maximumf %19, %20 : vector<16x16xf32>
    %cst_19 = arith.constant 0.000000e+00 : f32
    %22 = vector.broadcast %cst_19 : f32 to vector<48x16xf32>
    %c0_20 = arith.constant 0 : index
    %c0_21 = arith.constant 0 : index
    %23 = vector.load %arg23[%c0_20, %c0_21] : memref<144x16xf32, #tpu.memory_space<vmem>>, vector<48x16xf32>
    tpu.vector_store %arg23[%c0_20, %c0_21], %22 {strides = array<i32>} : memref<144x16xf32, #tpu.memory_space<vmem>>, vector<48x16xf32>,
    %24 = vector.extract_strided_slice %21 {offsets = [0, 0], sizes = [16, 15], strides = [1, 1]} : vector<16x16xf32> to vector<16x15xf32>
    %c0_22 = arith.constant 0 : index
    %c1_23 = arith.constant 1 : index
    %25 = vector.load %arg23[%c0_22, %c1_23] : memref<144x16xf32, #tpu.memory_space<vmem>>, vector<16x15xf32>
    tpu.vector_store %arg23[%c0_22, %c1_23], %24 {strides = array<i32>} : memref<144x16xf32, #tpu.memory_space<vmem>>, vector<16x15xf32>,
    %c16_24 = arith.constant 16 : index
    %c0_25 = arith.constant 0 : index
    %26 = vector.load %arg23[%c16_24, %c0_25] : memref<144x16xf32, #tpu.memory_space<vmem>>, vector<16x16xf32>
    tpu.vector_store %arg23[%c16_24, %c0_25], %21 {strides = array<i32>} : memref<144x16xf32, #tpu.memory_space<vmem>>, vector<16x16xf32>,
    %27 = vector.extract_strided_slice %21 {offsets = [0, 1], sizes = [16, 15], strides = [1, 1]} : vector<16x16xf32> to vector<16x15xf32>
    %c32_26 = arith.constant 32 : index
    %c0_27 = arith.constant 0 : index
    %28 = vector.load %arg23[%c32_26, %c0_27] : memref<144x16xf32, #tpu.memory_space<vmem>>, vector<16x15xf32>
    tpu.vector_store %arg23[%c32_26, %c0_27], %27 {strides = array<i32>} : memref<144x16xf32, #tpu.memory_space<vmem>>, vector<16x15xf32>,
    %c0_28 = arith.constant 0 : index
    %c0_29 = arith.constant 0 : index
    %29 = vector.load %arg4[%c0_28, %c0_29] : memref<8x48xf32, #tpu.memory_space<vmem>>, vector<8x48xf32>
    %c0_30 = arith.constant 0 : index
    %c0_31 = arith.constant 0 : index
    %30 = vector.load %arg23[%c0_30, %c0_31] : memref<144x16xf32, #tpu.memory_space<vmem>>, vector<48x16xf32>
    %cst_32 = arith.constant dense<0.000000e+00> : vector<8x16xf32>
    %31 = tpu.matmul %29, %30, %cst_32 {dimension_numbers = #tpu.dot_dimension_numbers<[1], [0], [0], [1], [0, 0, 1, 1], [], []>} : vector<8x48xf32>, vector<48x16xf32>, vector<8x16xf32> -> vector<8x16xf32>
    %cst_33 = arith.constant 0.999994993 : f32
    %32 = vector.broadcast %cst_33 : f32 to vector<8x16xf32>
    %33 = arith.mulf %31, %32 : vector<8x16xf32>
    %cst_34 = arith.constant 0.000000e+00 : f32
    %34 = vector.broadcast %cst_34 : f32 to vector<8x16xf32>
    %35 = arith.maximumf %33, %34 : vector<8x16xf32>
    %cst_35 = arith.constant 0.000000e+00 : f32
    %36 = vector.broadcast %cst_35 : f32 to vector<24x16xf32>
    %c0_36 = arith.constant 0 : index
    %c0_37 = arith.constant 0 : index
    %37 = vector.load %arg23[%c0_36, %c0_37] : memref<144x16xf32, #tpu.memory_space<vmem>>, vector<24x16xf32>
    tpu.vector_store %arg23[%c0_36, %c0_37], %36 {strides = array<i32>} : memref<144x16xf32, #tpu.memory_space<vmem>>, vector<24x16xf32>,
    %38 = vector.extract_strided_slice %35 {offsets = [0, 0], sizes = [8, 15], strides = [1, 1]} : vector<8x16xf32> to vector<8x15xf32>
    %c0_38 = arith.constant 0 : index
    %c1_39 = arith.constant 1 : index
    %39 = vector.load %arg23[%c0_38, %c1_39] : memref<144x16xf32, #tpu.memory_space<vmem>>, vector<8x15xf32>
    tpu.vector_store %arg23[%c0_38, %c1_39], %38 {strides = array<i32>} : memref<144x16xf32, #tpu.memory_space<vmem>>, vector<8x15xf32>,
    %c8 = arith.constant 8 : index
    %c0_40 = arith.constant 0 : index
    %40 = vector.load %arg23[%c8, %c0_40] : memref<144x16xf32, #tpu.memory_space<vmem>>, vector<8x16xf32>
    tpu.vector_store %arg23[%c8, %c0_40], %35 {strides = array<i32>} : memref<144x16xf32, #tpu.memory_space<vmem>>, vector<8x16xf32>,
    %41 = vector.extract_strided_slice %35 {offsets = [0, 1], sizes = [8, 15], strides = [1, 1]} : vector<8x16xf32> to vector<8x15xf32>
    %c16_41 = arith.constant 16 : index
    %c0_42 = arith.constant 0 : index
    %42 = vector.load %arg23[%c16_41, %c0_42] : memref<144x16xf32, #tpu.memory_space<vmem>>, vector<8x15xf32>
    tpu.vector_store %arg23[%c16_41, %c0_42], %41 {strides = array<i32>} : memref<144x16xf32, #tpu.memory_space<vmem>>, vector<8x15xf32>,
    %c0_43 = arith.constant 0 : index
    %c0_44 = arith.constant 0 : index
    %43 = vector.load %arg5[%c0_43, %c0_44] : memref<8x24xf32, #tpu.memory_space<vmem>>, vector<8x24xf32>
    %c0_45 = arith.constant 0 : index
    %c0_46 = arith.constant 0 : index
    %44 = vector.load %arg23[%c0_45, %c0_46] : memref<144x16xf32, #tpu.memory_space<vmem>>, vector<24x16xf32>
    %cst_47 = arith.constant dense<0.000000e+00> : vector<8x16xf32>
    %45 = tpu.matmul %43, %44, %cst_47 {dimension_numbers = #tpu.dot_dimension_numbers<[1], [0], [0], [1], [0, 0, 1, 1], [], []>} : vector<8x24xf32>, vector<24x16xf32>, vector<8x16xf32> -> vector<8x16xf32>
    %cst_48 = arith.constant 0.999994993 : f32
    %46 = vector.broadcast %cst_48 : f32 to vector<8x16xf32>
    %47 = arith.mulf %45, %46 : vector<8x16xf32>
    %cst_49 = arith.constant 0.000000e+00 : f32
    %48 = vector.broadcast %cst_49 : f32 to vector<8x16xf32>
    %49 = arith.maximumf %47, %48 : vector<8x16xf32>
    %c0_50 = arith.constant 0 : index
    %c0_51 = arith.constant 0 : index
    %50 = vector.load %arg6[%c0_50, %c0_51] : memref<8x16xf32, #tpu.memory_space<vmem>>, vector<8x16xf32>
    %cst_52 = arith.constant dense<0.000000e+00> : vector<8x16xf32>
    %51 = tpu.matmul %50, %21, %cst_52 {dimension_numbers = #tpu.dot_dimension_numbers<[1], [0], [0], [1], [0, 0, 1, 1], [], []>} : vector<8x16xf32>, vector<16x16xf32>, vector<8x16xf32> -> vector<8x16xf32>
    %cst_53 = arith.constant 0.999994993 : f32
    %52 = vector.broadcast %cst_53 : f32 to vector<8x16xf32>
    %53 = arith.mulf %51, %52 : vector<8x16xf32>
    %cst_54 = arith.constant 0.000000e+00 : f32
    %54 = vector.broadcast %cst_54 : f32 to vector<8x16xf32>
    %55 = arith.maximumf %53, %54 : vector<8x16xf32>
    %cst_55 = arith.constant 0.000000e+00 : f32
    %56 = vector.broadcast %cst_55 : f32 to vector<16x16xf32>
    %c0_56 = arith.constant 0 : index
    %c0_57 = arith.constant 0 : index
    %57 = vector.load %arg23[%c0_56, %c0_57] : memref<144x16xf32, #tpu.memory_space<vmem>>, vector<16x16xf32>
    tpu.vector_store %arg23[%c0_56, %c0_57], %56 {strides = array<i32>} : memref<144x16xf32, #tpu.memory_space<vmem>>, vector<16x16xf32>,
    %58 = vector.extract_strided_slice %55 {offsets = [0, 0], sizes = [8, 15], strides = [1, 1]} : vector<8x16xf32> to vector<8x15xf32>
    %c0_58 = arith.constant 0 : index
    %c1_59 = arith.constant 1 : index
    %59 = vector.load %arg23[%c0_58, %c1_59] : memref<144x16xf32, #tpu.memory_space<vmem>>, vector<8x15xf32>
    tpu.vector_store %arg23[%c0_58, %c1_59], %58 {strides = array<i32>} : memref<144x16xf32, #tpu.memory_space<vmem>>, vector<8x15xf32>,
    %c8_60 = arith.constant 8 : index
    %c0_61 = arith.constant 0 : index
    %60 = vector.load %arg23[%c8_60, %c0_61] : memref<144x16xf32, #tpu.memory_space<vmem>>, vector<8x16xf32>
    tpu.vector_store %arg23[%c8_60, %c0_61], %55 {strides = array<i32>} : memref<144x16xf32, #tpu.memory_space<vmem>>, vector<8x16xf32>,
    %c0_62 = arith.constant 0 : index
    %c0_63 = arith.constant 0 : index
    %61 = vector.load %arg7[%c0_62, %c0_63] : memref<4x16xf32, #tpu.memory_space<vmem>>, vector<4x16xf32>
    %c0_64 = arith.constant 0 : index
    %c0_65 = arith.constant 0 : index
    %62 = vector.load %arg23[%c0_64, %c0_65] : memref<144x16xf32, #tpu.memory_space<vmem>>, vector<16x16xf32>
    %cst_66 = arith.constant dense<0.000000e+00> : vector<4x16xf32>
    %63 = tpu.matmul %61, %62, %cst_66 {dimension_numbers = #tpu.dot_dimension_numbers<[1], [0], [0], [1], [0, 0, 1, 1], [], []>} : vector<4x16xf32>, vector<16x16xf32>, vector<4x16xf32> -> vector<4x16xf32>
    %c0_67 = arith.constant 0 : index
    %c0_68 = arith.constant 0 : index
    %64 = vector.load %arg8[%c0_67, %c0_68] : memref<4x1xf32, #tpu.memory_space<vmem>>, vector<4x1xf32>
    %65 = vector.broadcast %64 : vector<4x1xf32> to vector<4x16xf32>
    %66 = arith.addf %63, %65 : vector<4x16xf32>
    %cst_69 = arith.constant 0.000000e+00 : f32
    %67 = vector.broadcast %cst_69 : f32 to vector<4x16xf32>
    %68 = arith.maximumf %66, %67 : vector<4x16xf32>
    %cst_70 = arith.constant 0.000000e+00 : f32
    %69 = vector.broadcast %cst_70 : f32 to vector<16x16xf32>
    %c0_71 = arith.constant 0 : index
    %c0_72 = arith.constant 0 : index
    %70 = vector.load %arg23[%c0_71, %c0_72] : memref<144x16xf32, #tpu.memory_space<vmem>>, vector<16x16xf32>
    tpu.vector_store %arg23[%c0_71, %c0_72], %69 {strides = array<i32>} : memref<144x16xf32, #tpu.memory_space<vmem>>, vector<16x16xf32>,
    %71 = vector.extract_strided_slice %68 {offsets = [0, 0], sizes = [4, 15], strides = [1, 1]} : vector<4x16xf32> to vector<4x15xf32>
    %c0_73 = arith.constant 0 : index
    %c1_74 = arith.constant 1 : index
    %72 = vector.load %arg23[%c0_73, %c1_74] : memref<144x16xf32, #tpu.memory_space<vmem>>, vector<4x15xf32>
    tpu.vector_store %arg23[%c0_73, %c1_74], %71 {strides = array<i32>} : memref<144x16xf32, #tpu.memory_space<vmem>>, vector<4x15xf32>,
    %c8_75 = arith.constant 8 : index
    %c0_76 = arith.constant 0 : index
    %73 = vector.load %arg23[%c8_75, %c0_76] : memref<144x16xf32, #tpu.memory_space<vmem>>, vector<4x16xf32>
    tpu.vector_store %arg23[%c8_75, %c0_76], %68 {strides = array<i32>} : memref<144x16xf32, #tpu.memory_space<vmem>>, vector<4x16xf32>,
    %c0_77 = arith.constant 0 : index
    %c0_78 = arith.constant 0 : index
    %74 = vector.load %arg9[%c0_77, %c0_78] : memref<4x16xf32, #tpu.memory_space<vmem>>, vector<4x16xf32>
    %c0_79 = arith.constant 0 : index
    %c0_80 = arith.constant 0 : index
    %75 = vector.load %arg23[%c0_79, %c0_80] : memref<144x16xf32, #tpu.memory_space<vmem>>, vector<16x16xf32>
    %cst_81 = arith.constant dense<0.000000e+00> : vector<4x16xf32>
    %76 = tpu.matmul %74, %75, %cst_81 {dimension_numbers = #tpu.dot_dimension_numbers<[1], [0], [0], [1], [0, 0, 1, 1], [], []>} : vector<4x16xf32>, vector<16x16xf32>, vector<4x16xf32> -> vector<4x16xf32>
    %c0_82 = arith.constant 0 : index
    %c0_83 = arith.constant 0 : index
    %77 = vector.load %arg10[%c0_82, %c0_83] : memref<4x1xf32, #tpu.memory_space<vmem>>, vector<4x1xf32>
    %78 = vector.broadcast %77 : vector<4x1xf32> to vector<4x16xf32>
    %79 = arith.addf %76, %78 : vector<4x16xf32>
    %cst_84 = arith.constant 0.000000e+00 : f32
    %80 = vector.broadcast %cst_84 : f32 to vector<4x16xf32>
    %81 = arith.maximumf %79, %80 : vector<4x16xf32>
    %c0_85 = arith.constant 0 : index
    %c0_86 = arith.constant 0 : index
    %82 = vector.load %arg11[%c0_85, %c0_86] : memref<4x8xf32, #tpu.memory_space<vmem>>, vector<4x8xf32>
    %cst_87 = arith.constant dense<0.000000e+00> : vector<4x16xf32>
    %83 = tpu.matmul %82, %55, %cst_87 {dimension_numbers = #tpu.dot_dimension_numbers<[1], [0], [0], [1], [0, 0, 1, 1], [], []>} : vector<4x8xf32>, vector<8x16xf32>, vector<4x16xf32> -> vector<4x16xf32>
    %c0_88 = arith.constant 0 : index
    %c0_89 = arith.constant 0 : index
    %84 = vector.load %arg12[%c0_88, %c0_89] : memref<4x1xf32, #tpu.memory_space<vmem>>, vector<4x1xf32>
    %85 = vector.broadcast %84 : vector<4x1xf32> to vector<4x16xf32>
    %86 = arith.addf %83, %85 : vector<4x16xf32>
    %87 = arith.addf %81, %86 : vector<4x16xf32>
    %cst_90 = arith.constant 0.000000e+00 : f32
    %88 = vector.broadcast %cst_90 : f32 to vector<4x16xf32>
    %89 = arith.maximumf %87, %88 : vector<4x16xf32>
    %cst_91 = arith.constant 0.000000e+00 : f32
    %90 = vector.broadcast %cst_91 : f32 to vector<16x16xf32>
    %c0_92 = arith.constant 0 : index
    %c0_93 = arith.constant 0 : index
    %91 = vector.load %arg23[%c0_92, %c0_93] : memref<144x16xf32, #tpu.memory_space<vmem>>, vector<16x16xf32>
    tpu.vector_store %arg23[%c0_92, %c0_93], %90 {strides = array<i32>} : memref<144x16xf32, #tpu.memory_space<vmem>>, vector<16x16xf32>,
    %92 = vector.extract_strided_slice %89 {offsets = [0, 0], sizes = [4, 14], strides = [1, 1]} : vector<4x16xf32> to vector<4x14xf32>
    %c0_94 = arith.constant 0 : index
    %c2 = arith.constant 2 : index
    %93 = vector.load %arg23[%c0_94, %c2] : memref<144x16xf32, #tpu.memory_space<vmem>>, vector<4x14xf32>
    tpu.vector_store %arg23[%c0_94, %c2], %92 {strides = array<i32>} : memref<144x16xf32, #tpu.memory_space<vmem>>, vector<4x14xf32>,
    %c8_95 = arith.constant 8 : index
    %c0_96 = arith.constant 0 : index
    %94 = vector.load %arg23[%c8_95, %c0_96] : memref<144x16xf32, #tpu.memory_space<vmem>>, vector<4x16xf32>
    tpu.vector_store %arg23[%c8_95, %c0_96], %89 {strides = array<i32>} : memref<144x16xf32, #tpu.memory_space<vmem>>, vector<4x16xf32>,
    %c0_97 = arith.constant 0 : index
    %c0_98 = arith.constant 0 : index
    %95 = vector.load %arg13[%c0_97, %c0_98] : memref<2x16xf32, #tpu.memory_space<vmem>>, vector<2x16xf32>
    %c0_99 = arith.constant 0 : index
    %c0_100 = arith.constant 0 : index
    %96 = vector.load %arg23[%c0_99, %c0_100] : memref<144x16xf32, #tpu.memory_space<vmem>>, vector<16x16xf32>
    %cst_101 = arith.constant dense<0.000000e+00> : vector<2x16xf32>
    %97 = tpu.matmul %95, %96, %cst_101 {dimension_numbers = #tpu.dot_dimension_numbers<[1], [0], [0], [1], [0, 0, 1, 1], [], []>} : vector<2x16xf32>, vector<16x16xf32>, vector<2x16xf32> -> vector<2x16xf32>
    %c0_102 = arith.constant 0 : index
    %c0_103 = arith.constant 0 : index
    %98 = vector.load %arg14[%c0_102, %c0_103] : memref<2x1xf32, #tpu.memory_space<vmem>>, vector<2x1xf32>
    %99 = vector.broadcast %98 : vector<2x1xf32> to vector<2x16xf32>
    %100 = arith.addf %97, %99 : vector<2x16xf32>
    %cst_104 = arith.constant 0.000000e+00 : f32
    %101 = vector.broadcast %cst_104 : f32 to vector<2x16xf32>
    %102 = arith.maximumf %100, %101 : vector<2x16xf32>
    %cst_105 = arith.constant 0.000000e+00 : f32
    %103 = vector.broadcast %cst_105 : f32 to vector<16x16xf32>
    %c0_106 = arith.constant 0 : index
    %c0_107 = arith.constant 0 : index
    %104 = vector.load %arg23[%c0_106, %c0_107] : memref<144x16xf32, #tpu.memory_space<vmem>>, vector<16x16xf32>
    tpu.vector_store %arg23[%c0_106, %c0_107], %103 {strides = array<i32>} : memref<144x16xf32, #tpu.memory_space<vmem>>, vector<16x16xf32>,
    %105 = vector.extract_strided_slice %102 {offsets = [0, 0], sizes = [2, 14], strides = [1, 1]} : vector<2x16xf32> to vector<2x14xf32>
    %c0_108 = arith.constant 0 : index
    %c2_109 = arith.constant 2 : index
    %106 = vector.load %arg23[%c0_108, %c2_109] : memref<144x16xf32, #tpu.memory_space<vmem>>, vector<2x14xf32>
    tpu.vector_store %arg23[%c0_108, %c2_109], %105 {strides = array<i32>} : memref<144x16xf32, #tpu.memory_space<vmem>>, vector<2x14xf32>,
    %c8_110 = arith.constant 8 : index
    %c0_111 = arith.constant 0 : index
    %107 = vector.load %arg23[%c8_110, %c0_111] : memref<144x16xf32, #tpu.memory_space<vmem>>, vector<2x16xf32>
    tpu.vector_store %arg23[%c8_110, %c0_111], %102 {strides = array<i32>} : memref<144x16xf32, #tpu.memory_space<vmem>>, vector<2x16xf32>,
    %c0_112 = arith.constant 0 : index
    %c0_113 = arith.constant 0 : index
    %108 = vector.load %arg15[%c0_112, %c0_113] : memref<2x16xf32, #tpu.memory_space<vmem>>, vector<2x16xf32>
    %c0_114 = arith.constant 0 : index
    %c0_115 = arith.constant 0 : index
    %109 = vector.load %arg23[%c0_114, %c0_115] : memref<144x16xf32, #tpu.memory_space<vmem>>, vector<16x16xf32>
    %cst_116 = arith.constant dense<0.000000e+00> : vector<2x16xf32>
    %110 = tpu.matmul %108, %109, %cst_116 {dimension_numbers = #tpu.dot_dimension_numbers<[1], [0], [0], [1], [0, 0, 1, 1], [], []>} : vector<2x16xf32>, vector<16x16xf32>, vector<2x16xf32> -> vector<2x16xf32>
    %c0_117 = arith.constant 0 : index
    %c0_118 = arith.constant 0 : index
    %111 = vector.load %arg16[%c0_117, %c0_118] : memref<2x1xf32, #tpu.memory_space<vmem>>, vector<2x1xf32>
    %112 = vector.broadcast %111 : vector<2x1xf32> to vector<2x16xf32>
    %113 = arith.addf %110, %112 : vector<2x16xf32>
    %cst_119 = arith.constant 0.000000e+00 : f32
    %114 = vector.broadcast %cst_119 : f32 to vector<2x16xf32>
    %115 = arith.maximumf %113, %114 : vector<2x16xf32>
    %c0_120 = arith.constant 0 : index
    %c0_121 = arith.constant 0 : index
    %116 = vector.load %arg17[%c0_120, %c0_121] : memref<2x4xf32, #tpu.memory_space<vmem>>, vector<2x4xf32>
    %cst_122 = arith.constant dense<0.000000e+00> : vector<2x16xf32>
    %117 = tpu.matmul %116, %89, %cst_122 {dimension_numbers = #tpu.dot_dimension_numbers<[1], [0], [0], [1], [0, 0, 1, 1], [], []>} : vector<2x4xf32>, vector<4x16xf32>, vector<2x16xf32> -> vector<2x16xf32>
    %c0_123 = arith.constant 0 : index
    %c0_124 = arith.constant 0 : index
    %118 = vector.load %arg18[%c0_123, %c0_124] : memref<2x1xf32, #tpu.memory_space<vmem>>, vector<2x1xf32>
    %119 = vector.broadcast %118 : vector<2x1xf32> to vector<2x16xf32>
    %120 = arith.addf %117, %119 : vector<2x16xf32>
    %121 = arith.addf %115, %120 : vector<2x16xf32>
    %cst_125 = arith.constant 0.000000e+00 : f32
    %122 = vector.broadcast %cst_125 : f32 to vector<2x16xf32>
    %123 = arith.maximumf %121, %122 : vector<2x16xf32>
    %c0_126 = arith.constant 0 : index
    %c0_127 = arith.constant 0 : index
    %124 = vector.load %arg19[%c0_126, %c0_127] : memref<8x2xf32, #tpu.memory_space<vmem>>, vector<8x2xf32>
    %cst_128 = arith.constant dense<0.000000e+00> : vector<8x16xf32>
    %125 = tpu.matmul %124, %123, %cst_128 {dimension_numbers = #tpu.dot_dimension_numbers<[1], [0], [0], [1], [0, 0, 1, 1], [], []>} : vector<8x2xf32>, vector<2x16xf32>, vector<8x16xf32> -> vector<8x16xf32>
    %cst_129 = arith.constant 0.999994993 : f32
    %126 = vector.broadcast %cst_129 : f32 to vector<8x16xf32>
    %127 = arith.mulf %125, %126 : vector<8x16xf32>
    %cst_130 = arith.constant 0.000000e+00 : f32
    %128 = vector.broadcast %cst_130 : f32 to vector<8x16xf32>
    %129 = arith.maximumf %127, %128 : vector<8x16xf32>
    %c0_131 = arith.constant 0 : index
    %c0_132 = arith.constant 0 : index
    %130 = vector.load %arg23[%c0_131, %c0_132] : memref<144x16xf32, #tpu.memory_space<vmem>>, vector<8x16xf32>
    tpu.vector_store %arg23[%c0_131, %c0_132], %49 {strides = array<i32>} : memref<144x16xf32, #tpu.memory_space<vmem>>, vector<8x16xf32>,
    %c8_133 = arith.constant 8 : index
    %c0_134 = arith.constant 0 : index
    %131 = vector.load %arg23[%c8_133, %c0_134] : memref<144x16xf32, #tpu.memory_space<vmem>>, vector<8x16xf32>
    tpu.vector_store %arg23[%c8_133, %c0_134], %129 {strides = array<i32>} : memref<144x16xf32, #tpu.memory_space<vmem>>, vector<8x16xf32>,
    %c0_135 = arith.constant 0 : index
    %c0_136 = arith.constant 0 : index
    %132 = vector.load %arg23[%c0_135, %c0_136] : memref<144x16xf32, #tpu.memory_space<vmem>>, vector<16x16xf32>
    %cst_137 = arith.constant 0.999994993 : f32
    %133 = vector.broadcast %cst_137 : f32 to vector<16x16xf32>
    %134 = arith.mulf %132, %133 : vector<16x16xf32>
    %cst_138 = arith.constant 3.000000e+00 : f32
    %135 = vector.broadcast %cst_138 : f32 to vector<16x16xf32>
    %136 = arith.addf %134, %135 : vector<16x16xf32>
    %cst_139 = arith.constant 0.000000e+00 : f32
    %cst_140 = arith.constant 6.000000e+00 : f32
    %137 = vector.broadcast %cst_139 : f32 to vector<16x16xf32>
    %138 = arith.maximumf %137, %136 : vector<16x16xf32>
    %139 = vector.broadcast %cst_140 : f32 to vector<16x16xf32>
    %140 = arith.minimumf %139, %138 : vector<16x16xf32>
    %141 = arith.mulf %134, %140 : vector<16x16xf32>
    %cst_141 = arith.constant 0.166666672 : f32
    %142 = vector.broadcast %cst_141 : f32 to vector<16x16xf32>
    %143 = arith.mulf %141, %142 : vector<16x16xf32>
    %144 = arith.addf %143, %1 : vector<16x16xf32>
    %cst_142 = arith.constant 0.000000e+00 : f32
    %145 = vector.broadcast %cst_142 : f32 to vector<144x16xf32>
    %c0_143 = arith.constant 0 : index
    %c0_144 = arith.constant 0 : index
    %146 = vector.load %arg23[%c0_143, %c0_144] : memref<144x16xf32, #tpu.memory_space<vmem>>, vector<144x16xf32>
    tpu.vector_store %arg23[%c0_143, %c0_144], %145 {strides = array<i32>} : memref<144x16xf32, #tpu.memory_space<vmem>>, vector<144x16xf32>,
    %147 = vector.extract_strided_slice %144 {offsets = [0, 0], sizes = [16, 12], strides = [1, 1]} : vector<16x16xf32> to vector<16x12xf32>
    %c0_145 = arith.constant 0 : index
    %c4 = arith.constant 4 : index
    %148 = vector.load %arg23[%c0_145, %c4] : memref<144x16xf32, #tpu.memory_space<vmem>>, vector<16x12xf32>
    tpu.vector_store %arg23[%c0_145, %c4], %147 {strides = array<i32>} : memref<144x16xf32, #tpu.memory_space<vmem>>, vector<16x12xf32>,
    %149 = vector.extract_strided_slice %144 {offsets = [0, 0], sizes = [16, 13], strides = [1, 1]} : vector<16x16xf32> to vector<16x13xf32>
    %c16_146 = arith.constant 16 : index
    %c3 = arith.constant 3 : index
    %150 = vector.load %arg23[%c16_146, %c3] : memref<144x16xf32, #tpu.memory_space<vmem>>, vector<16x13xf32>
    tpu.vector_store %arg23[%c16_146, %c3], %149 {strides = array<i32>} : memref<144x16xf32, #tpu.memory_space<vmem>>, vector<16x13xf32>,
    %151 = vector.extract_strided_slice %144 {offsets = [0, 0], sizes = [16, 14], strides = [1, 1]} : vector<16x16xf32> to vector<16x14xf32>
    %c32_147 = arith.constant 32 : index
    %c2_148 = arith.constant 2 : index
    %152 = vector.load %arg23[%c32_147, %c2_148] : memref<144x16xf32, #tpu.memory_space<vmem>>, vector<16x14xf32>
    tpu.vector_store %arg23[%c32_147, %c2_148], %151 {strides = array<i32>} : memref<144x16xf32, #tpu.memory_space<vmem>>, vector<16x14xf32>,
    %153 = vector.extract_strided_slice %144 {offsets = [0, 0], sizes = [16, 15], strides = [1, 1]} : vector<16x16xf32> to vector<16x15xf32>
    %c48 = arith.constant 48 : index
    %c1_149 = arith.constant 1 : index
    %154 = vector.load %arg23[%c48, %c1_149] : memref<144x16xf32, #tpu.memory_space<vmem>>, vector<16x15xf32>
    tpu.vector_store %arg23[%c48, %c1_149], %153 {strides = array<i32>} : memref<144x16xf32, #tpu.memory_space<vmem>>, vector<16x15xf32>,
    %c64 = arith.constant 64 : index
    %c0_150 = arith.constant 0 : index
    %155 = vector.load %arg23[%c64, %c0_150] : memref<144x16xf32, #tpu.memory_space<vmem>>, vector<16x16xf32>
    tpu.vector_store %arg23[%c64, %c0_150], %144 {strides = array<i32>} : memref<144x16xf32, #tpu.memory_space<vmem>>, vector<16x16xf32>,
    %156 = vector.extract_strided_slice %144 {offsets = [0, 1], sizes = [16, 15], strides = [1, 1]} : vector<16x16xf32> to vector<16x15xf32>
    %c80 = arith.constant 80 : index
    %c0_151 = arith.constant 0 : index
    %157 = vector.load %arg23[%c80, %c0_151] : memref<144x16xf32, #tpu.memory_space<vmem>>, vector<16x15xf32>
    tpu.vector_store %arg23[%c80, %c0_151], %156 {strides = array<i32>} : memref<144x16xf32, #tpu.memory_space<vmem>>, vector<16x15xf32>,
    %158 = vector.extract_strided_slice %144 {offsets = [0, 2], sizes = [16, 14], strides = [1, 1]} : vector<16x16xf32> to vector<16x14xf32>
    %c96 = arith.constant 96 : index
    %c0_152 = arith.constant 0 : index
    %159 = vector.load %arg23[%c96, %c0_152] : memref<144x16xf32, #tpu.memory_space<vmem>>, vector<16x14xf32>
    tpu.vector_store %arg23[%c96, %c0_152], %158 {strides = array<i32>} : memref<144x16xf32, #tpu.memory_space<vmem>>, vector<16x14xf32>,
    %160 = vector.extract_strided_slice %144 {offsets = [0, 3], sizes = [16, 13], strides = [1, 1]} : vector<16x16xf32> to vector<16x13xf32>
    %c112 = arith.constant 112 : index
    %c0_153 = arith.constant 0 : index
    %161 = vector.load %arg23[%c112, %c0_153] : memref<144x16xf32, #tpu.memory_space<vmem>>, vector<16x13xf32>
    tpu.vector_store %arg23[%c112, %c0_153], %160 {strides = array<i32>} : memref<144x16xf32, #tpu.memory_space<vmem>>, vector<16x13xf32>,
    %162 = vector.extract_strided_slice %144 {offsets = [0, 4], sizes = [16, 12], strides = [1, 1]} : vector<16x16xf32> to vector<16x12xf32>
    %c128 = arith.constant 128 : index
    %c0_154 = arith.constant 0 : index
    %163 = vector.load %arg23[%c128, %c0_154] : memref<144x16xf32, #tpu.memory_space<vmem>>, vector<16x12xf32>
    tpu.vector_store %arg23[%c128, %c0_154], %162 {strides = array<i32>} : memref<144x16xf32, #tpu.memory_space<vmem>>, vector<16x12xf32>,
    %c0_155 = arith.constant 0 : index
    %c0_156 = arith.constant 0 : index
    %164 = vector.load %arg20[%c0_155, %c0_156] : memref<96x144xf32, #tpu.memory_space<vmem>>, vector<96x144xf32>
    %c0_157 = arith.constant 0 : index
    %c0_158 = arith.constant 0 : index
    %165 = vector.load %arg23[%c0_157, %c0_158] : memref<144x16xf32, #tpu.memory_space<vmem>>, vector<144x16xf32>
    %cst_159 = arith.constant dense<0.000000e+00> : vector<96x16xf32>
    %166 = tpu.matmul %164, %165, %cst_159 {dimension_numbers = #tpu.dot_dimension_numbers<[1], [0], [0], [1], [0, 0, 1, 1], [], []>} : vector<96x144xf32>, vector<144x16xf32>, vector<96x16xf32> -> vector<96x16xf32>
    %cst_160 = arith.constant 0.999994993 : f32
    %167 = vector.broadcast %cst_160 : f32 to vector<96x16xf32>
    %168 = arith.mulf %166, %167 : vector<96x16xf32>
    %cst_161 = arith.constant 0.000000e+00 : f32
    %169 = vector.broadcast %cst_161 : f32 to vector<96x16xf32>
    %170 = arith.maximumf %168, %169 : vector<96x16xf32>
    %c0_162 = arith.constant 0 : index
    %c0_163 = arith.constant 0 : index
    %171 = vector.load %arg21[%c0_162, %c0_163] : memref<32x96xf32, #tpu.memory_space<vmem>>, vector<32x96xf32>
    %cst_164 = arith.constant dense<0.000000e+00> : vector<32x16xf32>
    %172 = tpu.matmul %171, %170, %cst_164 {dimension_numbers = #tpu.dot_dimension_numbers<[1], [0], [0], [1], [0, 0, 1, 1], [], []>} : vector<32x96xf32>, vector<96x16xf32>, vector<32x16xf32> -> vector<32x16xf32>
    %c0_165 = arith.constant 0 : index
    %c0_166 = arith.constant 0 : index
    %c0_167 = arith.constant 0 : index
    %173 = vector.load %arg22[%c0_165, %c0_166, %c0_167] : memref<1x32x16xf32, #tpu.memory_space<vmem>>, vector<1x32x16xf32>
    %174 = vector.shape_cast %173 : vector<1x32x16xf32> to vector<32x16xf32>
    %175 = vector.shape_cast %172 : vector<32x16xf32> to vector<1x32x16xf32>
    tpu.vector_store %arg22[%c0_165, %c0_166, %c0_167], %175 {strides = array<i32>} : memref<1x32x16xf32, #tpu.memory_space<vmem>>, vector<1x32x16xf32>,
    return
  }
  func.func @transform_0(%arg0: i32) -> (i32, i32, i32) {
    %c0_i32 = arith.constant 0 : i32
    %c0_i32_0 = arith.constant 0 : i32
    %c0_i32_1 = arith.constant 0 : i32
    return %arg0, %c0_i32, %c0_i32_0 : i32, i32, i32
  }
  func.func @transform_1(%arg0: i32) -> (i32, i32) {
    %c0_i32 = arith.constant 0 : i32
    %c0_i32_0 = arith.constant 0 : i32
    %c0_i32_1 = arith.constant 0 : i32
    return %c0_i32, %c0_i32_0 : i32, i32
  }
  func.func @transform_2(%arg0: i32) -> (i32, i32) {
    %c0_i32 = arith.constant 0 : i32
    %c0_i32_0 = arith.constant 0 : i32
    %c0_i32_1 = arith.constant 0 : i32
    return %c0_i32, %c0_i32_0 : i32, i32
  }
  func.func @transform_3(%arg0: i32) -> (i32, i32) {
    %c0_i32 = arith.constant 0 : i32
    %c0_i32_0 = arith.constant 0 : i32
    %c0_i32_1 = arith.constant 0 : i32
    return %c0_i32, %c0_i32_0 : i32, i32
  }
  func.func @transform_4(%arg0: i32) -> (i32, i32) {
    %c0_i32 = arith.constant 0 : i32
    %c0_i32_0 = arith.constant 0 : i32
    %c0_i32_1 = arith.constant 0 : i32
    return %c0_i32, %c0_i32_0 : i32, i32
  }
  func.func @transform_5(%arg0: i32) -> (i32, i32) {
    %c0_i32 = arith.constant 0 : i32
    %c0_i32_0 = arith.constant 0 : i32
    %c0_i32_1 = arith.constant 0 : i32
    return %c0_i32, %c0_i32_0 : i32, i32
  }
  func.func @transform_6(%arg0: i32) -> (i32, i32) {
    %c0_i32 = arith.constant 0 : i32
    %c0_i32_0 = arith.constant 0 : i32
    %c0_i32_1 = arith.constant 0 : i32
    return %c0_i32, %c0_i32_0 : i32, i32
  }
  func.func @transform_7(%arg0: i32) -> (i32, i32) {
    %c0_i32 = arith.constant 0 : i32
    %c0_i32_0 = arith.constant 0 : i32
    %c0_i32_1 = arith.constant 0 : i32
    return %c0_i32, %c0_i32_0 : i32, i32
  }
  func.func @transform_8(%arg0: i32) -> (i32, i32) {
    %c0_i32 = arith.constant 0 : i32
    %c0_i32_0 = arith.constant 0 : i32
    %c0_i32_1 = arith.constant 0 : i32
    return %c0_i32, %c0_i32_0 : i32, i32
  }
  func.func @transform_9(%arg0: i32) -> (i32, i32) {
    %c0_i32 = arith.constant 0 : i32
    %c0_i32_0 = arith.constant 0 : i32
    %c0_i32_1 = arith.constant 0 : i32
    return %c0_i32, %c0_i32_0 : i32, i32
  }
  func.func @transform_10(%arg0: i32) -> (i32, i32) {
    %c0_i32 = arith.constant 0 : i32
    %c0_i32_0 = arith.constant 0 : i32
    %c0_i32_1 = arith.constant 0 : i32
    return %c0_i32, %c0_i32_0 : i32, i32
  }
  func.func @transform_11(%arg0: i32) -> (i32, i32) {
    %c0_i32 = arith.constant 0 : i32
    %c0_i32_0 = arith.constant 0 : i32
    %c0_i32_1 = arith.constant 0 : i32
    return %c0_i32, %c0_i32_0 : i32, i32
  }
  func.func @transform_12(%arg0: i32) -> (i32, i32) {
    %c0_i32 = arith.constant 0 : i32
    %c0_i32_0 = arith.constant 0 : i32
    %c0_i32_1 = arith.constant 0 : i32
    return %c0_i32, %c0_i32_0 : i32, i32
  }
  func.func @transform_13(%arg0: i32) -> (i32, i32) {
    %c0_i32 = arith.constant 0 : i32
    %c0_i32_0 = arith.constant 0 : i32
    %c0_i32_1 = arith.constant 0 : i32
    return %c0_i32, %c0_i32_0 : i32, i32
  }
  func.func @transform_14(%arg0: i32) -> (i32, i32) {
    %c0_i32 = arith.constant 0 : i32
    %c0_i32_0 = arith.constant 0 : i32
    %c0_i32_1 = arith.constant 0 : i32
    return %c0_i32, %c0_i32_0 : i32, i32
  }
  func.func @transform_15(%arg0: i32) -> (i32, i32) {
    %c0_i32 = arith.constant 0 : i32
    %c0_i32_0 = arith.constant 0 : i32
    %c0_i32_1 = arith.constant 0 : i32
    return %c0_i32, %c0_i32_0 : i32, i32
  }
  func.func @transform_16(%arg0: i32) -> (i32, i32) {
    %c0_i32 = arith.constant 0 : i32
    %c0_i32_0 = arith.constant 0 : i32
    %c0_i32_1 = arith.constant 0 : i32
    return %c0_i32, %c0_i32_0 : i32, i32
  }
  func.func @transform_17(%arg0: i32) -> (i32, i32) {
    %c0_i32 = arith.constant 0 : i32
    %c0_i32_0 = arith.constant 0 : i32
    %c0_i32_1 = arith.constant 0 : i32
    return %c0_i32, %c0_i32_0 : i32, i32
  }
  func.func @transform_18(%arg0: i32) -> (i32, i32) {
    %c0_i32 = arith.constant 0 : i32
    %c0_i32_0 = arith.constant 0 : i32
    %c0_i32_1 = arith.constant 0 : i32
    return %c0_i32, %c0_i32_0 : i32, i32
  }
  func.func @transform_19(%arg0: i32) -> (i32, i32) {
    %c0_i32 = arith.constant 0 : i32
    %c0_i32_0 = arith.constant 0 : i32
    %c0_i32_1 = arith.constant 0 : i32
    return %c0_i32, %c0_i32_0 : i32, i32
  }
  func.func @transform_20(%arg0: i32) -> (i32, i32) {
    %c0_i32 = arith.constant 0 : i32
    %c0_i32_0 = arith.constant 0 : i32
    %c0_i32_1 = arith.constant 0 : i32
    return %c0_i32, %c0_i32_0 : i32, i32
  }
  func.func @transform_21(%arg0: i32) -> (i32, i32, i32) {
    %c0_i32 = arith.constant 0 : i32
    %c0_i32_0 = arith.constant 0 : i32
    %c0_i32_1 = arith.constant 0 : i32
    return %arg0, %c0_i32, %c0_i32_0 : i32, i32, i32
  }
}

</mosaic_0001>

<llo_original>
// kernel: pssp_repr_forward.1
$region0: #{pssp_repr_forward.1}
  #allocation0 [shape = 'u32[]', space=smem, size = 0x4, offset = 0x4, fixed_abs, tag = 'smem constant byte address 0x4 - core index']
  #allocation1 [shape = 'u32[72,128]{1,0:T(1,128)}', space=vmem, size = 0x9000, scoped, tag = 'internal scratch']
  #allocation2 [shape = 'f32[144,16]{1,0:T(8,128)}', space=vmem, size = 0x12000, scoped, tag = 'scratch operand']
  %s0 = inlined_call_operand.vmem [shape: f32[2,16,16], index: 0, kind: input, shape index: {}]
  %s1 = inlined_call_operand.vmem [shape: f32[16,16], index: 1, kind: input, shape index: {}]
  %s2 = inlined_call_operand.vmem [shape: f32[16,48], index: 2, kind: input, shape index: {}]
  %s3 = inlined_call_operand.vmem [shape: f32[8,48], index: 3, kind: input, shape index: {}]
  %s4 = inlined_call_operand.vmem [shape: f32[8,24], index: 4, kind: input, shape index: {}]
  %s5 = inlined_call_operand.vmem [shape: f32[8,16], index: 5, kind: input, shape index: {}]
  %s6 = inlined_call_operand.vmem [shape: f32[4,16], index: 6, kind: input, shape index: {}]
  %s7 = inlined_call_operand.vmem [shape: f32[4,1], index: 7, kind: input, shape index: {}]
  %s8 = inlined_call_operand.vmem [shape: f32[4,16], index: 8, kind: input, shape index: {}]
  %s9 = inlined_call_operand.vmem [shape: f32[4,1], index: 9, kind: input, shape index: {}]
  %s10 = inlined_call_operand.vmem [shape: f32[4,8], index: 10, kind: input, shape index: {}]
  %s11 = inlined_call_operand.vmem [shape: f32[4,1], index: 11, kind: input, shape index: {}]
  %s12 = inlined_call_operand.vmem [shape: f32[2,16], index: 12, kind: input, shape index: {}]
  %s13 = inlined_call_operand.vmem [shape: f32[2,1], index: 13, kind: input, shape index: {}]
  %s14 = inlined_call_operand.vmem [shape: f32[2,16], index: 14, kind: input, shape index: {}]
  %s15 = inlined_call_operand.vmem [shape: f32[2,1], index: 15, kind: input, shape index: {}]
  %s16 = inlined_call_operand.vmem [shape: f32[2,4], index: 16, kind: input, shape index: {}]
  %s17 = inlined_call_operand.vmem [shape: f32[2,1], index: 17, kind: input, shape index: {}]
  %s18 = inlined_call_operand.vmem [shape: f32[8,2], index: 18, kind: input, shape index: {}]
  %s19 = inlined_call_operand.vmem [shape: f32[96,144], index: 19, kind: input, shape index: {}]
  %s20 = inlined_call_operand.vmem [shape: f32[32,96], index: 20, kind: input, shape index: {}]
  %s21 = inlined_call_operand.vmem [shape: f32[2,32,16], index: 21, kind: output, shape index: {}]
  %s22 = sld [smem:[#allocation0]]
  $region117: #{pssp_repr_forward.1} parent=0
    _
  %s24 = ssub.s32 1, %s22
  %s25 = scalar_select 0, %s24, %s22
  loop: start=0, step=1, limit=4
  $region2: #{pssp_repr_forward.1} parent=0 // loop_pre_header
    _
  $region3: #{pssp_repr_forward.1} parent=0 // loop_header
    %s27 = sphi 0, %s31
    %p28 = scmp.ge.s32.totalorder %s27, 4
    %s37 = sphi 0, %s39
    %s40 = sphi 0, %s37
    %s41 = sphi 0, %s40
    %s57 = sphi 0, %s41
    %s61 = sphi 0, %s61
    %s63 = sphi 0, %s61
    %s64 = sphi 0, %s63
    %s78 = sphi 0, %s64
    %s82 = sphi 0, %s82
    %s84 = sphi 0, %s82
    %s85 = sphi 0, %s84
    %s99 = sphi 0, %s85
    %s103 = sphi 0, %s103
    %s105 = sphi 0, %s103
    %s106 = sphi 0, %s105
    %s120 = sphi 0, %s106
    %s124 = sphi 0, %s124
    %s126 = sphi 0, %s124
    %s127 = sphi 0, %s126
    %s141 = sphi 0, %s127
    %s145 = sphi 0, %s145
    %s147 = sphi 0, %s145
    %s148 = sphi 0, %s147
    %s162 = sphi 0, %s148
    %s166 = sphi 0, %s166
    %s168 = sphi 0, %s166
    %s169 = sphi 0, %s168
    %s183 = sphi 0, %s169
    %s187 = sphi 0, %s187
    %s189 = sphi 0, %s187
    %s190 = sphi 0, %s189
    %s204 = sphi 0, %s190
    %s208 = sphi 0, %s208
    %s210 = sphi 0, %s208
    %s211 = sphi 0, %s210
    %s225 = sphi 0, %s211
    %s229 = sphi 0, %s229
    %s231 = sphi 0, %s229
    %s232 = sphi 0, %s231
    %s246 = sphi 0, %s232
    %s250 = sphi 0, %s250
    %s252 = sphi 0, %s250
    %s253 = sphi 0, %s252
    %s267 = sphi 0, %s253
    %s271 = sphi 0, %s271
    %s273 = sphi 0, %s271
    %s274 = sphi 0, %s273
    %s288 = sphi 0, %s274
    %s292 = sphi 0, %s292
    %s294 = sphi 0, %s292
    %s295 = sphi 0, %s294
    %s309 = sphi 0, %s295
    %s313 = sphi 0, %s313
    %s315 = sphi 0, %s313
    %s316 = sphi 0, %s315
    %s330 = sphi 0, %s316
    %s334 = sphi 0, %s334
    %s336 = sphi 0, %s334
    %s337 = sphi 0, %s336
    %s351 = sphi 0, %s337
    %s355 = sphi 0, %s355
    %s357 = sphi 0, %s355
    %s358 = sphi 0, %s357
    %s372 = sphi 0, %s358
    %s376 = sphi 0, %s376
    %s378 = sphi 0, %s376
    %s379 = sphi 0, %s378
    %s393 = sphi 0, %s379
    %s397 = sphi 0, %s397
    %s399 = sphi 0, %s397
    %s400 = sphi 0, %s399
    %s414 = sphi 0, %s400
    %s418 = sphi 0, %s418
    %s420 = sphi 0, %s418
    %s421 = sphi 0, %s420
    %s435 = sphi 0, %s421
    %s439 = sphi 0, %s439
    %s441 = sphi 0, %s439
    %s442 = sphi 0, %s441
    %s456 = sphi 0, %s442
    %s460 = sphi 0, %s460
    %s462 = sphi 0, %s460
    %s463 = sphi 0, %s462
    %s477 = sphi 0, %s463
    %s483 = sphi 0, %s485
    %s486 = sphi 0, %s483
    %s487 = sphi 0, %s486
    %s503 = sphi 0, %s487
  $region4: #{pssp_repr_forward.1} parent=0 // loop_header_branch
    %30 = sbr.rel (%p28) target = $region8
  $region5: #{pssp_repr_forward.1} parent=0 // loop_body
    %s32 = ssub.s32 %s27, 1
    %s33 = ssub.s32 %s27, 2
    %s34 = sadd.s32 %s27, 1
    %s35 = ssub.s32 %s27, %s34
    %p36 = scmp.eq.s32.totalorder %s35, 0
    %s38 = sadd.s32 %s37, 1
    %s39 = scalar_select %p36, %s37, %s38
    %p42 = pneg %p36
    %p43 = scmp.eq.s32.totalorder %s27, 1
    %p44 = por %p42, %p43
    %p45 = scmp.ne.s32.totalorder %s37, %s40
    %p46 = scmp.eq.s32.totalorder %s27, 0
    %p47 = por %p45, %p46
    %p48 = scmp.ne.s32.totalorder %s37, %s40
    %p49 = scmp.eq.s32.totalorder %s32, 1
    %p50 = por %p48, %p49
    %p51 = scmp.ne.s32.totalorder %s40, %s41
    %p52 = scmp.eq.s32.totalorder %s32, 0
    %p53 = por %p51, %p52
    %p54 = scmp.ne.s32.totalorder %s40, %s41
    %p55 = scmp.eq.s32.totalorder %s33, 1
    %p56 = por %p54, %p55
    %p58 = scmp.ne.s32.totalorder %s41, %s57
    %p59 = scmp.eq.s32.totalorder %s33, 0
    %p60 = por %p58, %p59
    %s62 = sadd.s32 %s61, 1
    %p65 = scmp.eq.s32.totalorder %s27, 1
    %p66 = scmp.ne.s32.totalorder %s61, %s63
    %p67 = scmp.eq.s32.totalorder %s27, 0
    %p68 = por %p66, %p67
    %p69 = scmp.ne.s32.totalorder %s61, %s63
    %p70 = scmp.eq.s32.totalorder %s32, 1
    %p71 = por %p69, %p70
    %p72 = scmp.ne.s32.totalorder %s63, %s64
    %p73 = scmp.eq.s32.totalorder %s32, 0
    %p74 = por %p72, %p73
    %p75 = scmp.ne.s32.totalorder %s63, %s64
    %p76 = scmp.eq.s32.totalorder %s33, 1
    %p77 = por %p75, %p76
    %p79 = scmp.ne.s32.totalorder %s64, %s78
    %p80 = scmp.eq.s32.totalorder %s33, 0
    %p81 = por %p79, %p80
    %s83 = sadd.s32 %s82, 1
    %p86 = scmp.eq.s32.totalorder %s27, 1
    %p87 = scmp.ne.s32.totalorder %s82, %s84
    %p88 = scmp.eq.s32.totalorder %s27, 0
    %p89 = por %p87, %p88
    %p90 = scmp.ne.s32.totalorder %s82, %s84
    %p91 = scmp.eq.s32.totalorder %s32, 1
    %p92 = por %p90, %p91
    %p93 = scmp.ne.s32.totalorder %s84, %s85
    %p94 = scmp.eq.s32.totalorder %s32, 0
    %p95 = por %p93, %p94
    %p96 = scmp.ne.s32.totalorder %s84, %s85
    %p97 = scmp.eq.s32.totalorder %s33, 1
    %p98 = por %p96, %p97
    %p100 = scmp.ne.s32.totalorder %s85, %s99
    %p101 = scmp.eq.s32.totalorder %s33, 0
    %p102 = por %p100, %p101
    %s104 = sadd.s32 %s103, 1
    %p107 = scmp.eq.s32.totalorder %s27, 1
    %p108 = scmp.ne.s32.totalorder %s103, %s105
    %p109 = scmp.eq.s32.totalorder %s27, 0
    %p110 = por %p108, %p109
    %p111 = scmp.ne.s32.totalorder %s103, %s105
    %p112 = scmp.eq.s32.totalorder %s32, 1
    %p113 = por %p111, %p112
    %p114 = scmp.ne.s32.totalorder %s105, %s106
    %p115 = scmp.eq.s32.totalorder %s32, 0
    %p116 = por %p114, %p115
    %p117 = scmp.ne.s32.totalorder %s105, %s106
    %p118 = scmp.eq.s32.totalorder %s33, 1
    %p119 = por %p117, %p118
    %p121 = scmp.ne.s32.totalorder %s106, %s120
    %p122 = scmp.eq.s32.totalorder %s33, 0
    %p123 = por %p121, %p122
    %s125 = sadd.s32 %s124, 1
    %p128 = scmp.eq.s32.totalorder %s27, 1
    %p129 = scmp.ne.s32.totalorder %s124, %s126
    %p130 = scmp.eq.s32.totalorder %s27, 0
    %p131 = por %p129, %p130
    %p132 = scmp.ne.s32.totalorder %s124, %s126
    %p133 = scmp.eq.s32.totalorder %s32, 1
    %p134 = por %p132, %p133
    %p135 = scmp.ne.s32.totalorder %s126, %s127
    %p136 = scmp.eq.s32.totalorder %s32, 0
    %p137 = por %p135, %p136
    %p138 = scmp.ne.s32.totalorder %s126, %s127
    %p139 = scmp.eq.s32.totalorder %s33, 1
    %p140 = por %p138, %p139
    %p142 = scmp.ne.s32.totalorder %s127, %s141
    %p143 = scmp.eq.s32.totalorder %s33, 0
    %p144 = por %p142, %p143
    %s146 = sadd.s32 %s145, 1
    %p149 = scmp.eq.s32.totalorder %s27, 1
    %p150 = scmp.ne.s32.totalorder %s145, %s147
    %p151 = scmp.eq.s32.totalorder %s27, 0
    %p152 = por %p150, %p151
    %p153 = scmp.ne.s32.totalorder %s145, %s147
    %p154 = scmp.eq.s32.totalorder %s32, 1
    %p155 = por %p153, %p154
    %p156 = scmp.ne.s32.totalorder %s147, %s148
    %p157 = scmp.eq.s32.totalorder %s32, 0
    %p158 = por %p156, %p157
    %p159 = scmp.ne.s32.totalorder %s147, %s148
    %p160 = scmp.eq.s32.totalorder %s33, 1
    %p161 = por %p159, %p160
    %p163 = scmp.ne.s32.totalorder %s148, %s162
    %p164 = scmp.eq.s32.totalorder %s33, 0
    %p165 = por %p163, %p164
    %s167 = sadd.s32 %s166, 1
    %p170 = scmp.eq.s32.totalorder %s27, 1
    %p171 = scmp.ne.s32.totalorder %s166, %s168
    %p172 = scmp.eq.s32.totalorder %s27, 0
    %p173 = por %p171, %p172
    %p174 = scmp.ne.s32.totalorder %s166, %s168
    %p175 = scmp.eq.s32.totalorder %s32, 1
    %p176 = por %p174, %p175
    %p177 = scmp.ne.s32.totalorder %s168, %s169
    %p178 = scmp.eq.s32.totalorder %s32, 0
    %p179 = por %p177, %p178
    %p180 = scmp.ne.s32.totalorder %s168, %s169
    %p181 = scmp.eq.s32.totalorder %s33, 1
    %p182 = por %p180, %p181
    %p184 = scmp.ne.s32.totalorder %s169, %s183
    %p185 = scmp.eq.s32.totalorder %s33, 0
    %p186 = por %p184, %p185
    %s188 = sadd.s32 %s187, 1
    %p191 = scmp.eq.s32.totalorder %s27, 1
    %p192 = scmp.ne.s32.totalorder %s187, %s189
    %p193 = scmp.eq.s32.totalorder %s27, 0
    %p194 = por %p192, %p193
    %p195 = scmp.ne.s32.totalorder %s187, %s189
    %p196 = scmp.eq.s32.totalorder %s32, 1
    %p197 = por %p195, %p196
    %p198 = scmp.ne.s32.totalorder %s189, %s190
    %p199 = scmp.eq.s32.totalorder %s32, 0
    %p200 = por %p198, %p199
    %p201 = scmp.ne.s32.totalorder %s189, %s190
    %p202 = scmp.eq.s32.totalorder %s33, 1
    %p203 = por %p201, %p202
    %p205 = scmp.ne.s32.totalorder %s190, %s204
    %p206 = scmp.eq.s32.totalorder %s33, 0
    %p207 = por %p205, %p206
    %s209 = sadd.s32 %s208, 1
    %p212 = scmp.eq.s32.totalorder %s27, 1
    %p213 = scmp.ne.s32.totalorder %s208, %s210
    %p214 = scmp.eq.s32.totalorder %s27, 0
    %p215 = por %p213, %p214
    %p216 = scmp.ne.s32.totalorder %s208, %s210
    %p217 = scmp.eq.s32.totalorder %s32, 1
    %p218 = por %p216, %p217
    %p219 = scmp.ne.s32.totalorder %s210, %s211
    %p220 = scmp.eq.s32.totalorder %s32, 0
    %p221 = por %p219, %p220
    %p222 = scmp.ne.s32.totalorder %s210, %s211
    %p223 = scmp.eq.s32.totalorder %s33, 1
    %p224 = por %p222, %p223
    %p226 = scmp.ne.s32.totalorder %s211, %s225
    %p227 = scmp.eq.s32.totalorder %s33, 0
    %p228 = por %p226, %p227
    %s230 = sadd.s32 %s229, 1
    %p233 = scmp.eq.s32.totalorder %s27, 1
    %p234 = scmp.ne.s32.totalorder %s229, %s231
    %p235 = scmp.eq.s32.totalorder %s27, 0
    %p236 = por %p234, %p235
    %p237 = scmp.ne.s32.totalorder %s229, %s231
    %p238 = scmp.eq.s32.totalorder %s32, 1
    %p239 = por %p237, %p238
    %p240 = scmp.ne.s32.totalorder %s231, %s232
    %p241 = scmp.eq.s32.totalorder %s32, 0
    %p242 = por %p240, %p241
    %p243 = scmp.ne.s32.totalorder %s231, %s232
    %p244 = scmp.eq.s32.totalorder %s33, 1
    %p245 = por %p243, %p244
    %p247 = scmp.ne.s32.totalorder %s232, %s246
    %p248 = scmp.eq.s32.totalorder %s33, 0
    %p249 = por %p247, %p248
    %s251 = sadd.s32 %s250, 1
    %p254 = scmp.eq.s32.totalorder %s27, 1
    %p255 = scmp.ne.s32.totalorder %s250, %s252
    %p256 = scmp.eq.s32.totalorder %s27, 0
    %p257 = por %p255, %p256
    %p258 = scmp.ne.s32.totalorder %s250, %s252
    %p259 = scmp.eq.s32.totalorder %s32, 1
    %p260 = por %p258, %p259
    %p261 = scmp.ne.s32.totalorder %s252, %s253
    %p262 = scmp.eq.s32.totalorder %s32, 0
    %p263 = por %p261, %p262
    %p264 = scmp.ne.s32.totalorder %s252, %s253
    %p265 = scmp.eq.s32.totalorder %s33, 1
    %p266 = por %p264, %p265
    %p268 = scmp.ne.s32.totalorder %s253, %s267
    %p269 = scmp.eq.s32.totalorder %s33, 0
    %p270 = por %p268, %p269
    %s272 = sadd.s32 %s271, 1
    %p275 = scmp.eq.s32.totalorder %s27, 1
    %p276 = scmp.ne.s32.totalorder %s271, %s273
    %p277 = scmp.eq.s32.totalorder %s27, 0
    %p278 = por %p276, %p277
    %p279 = scmp.ne.s32.totalorder %s271, %s273
    %p280 = scmp.eq.s32.totalorder %s32, 1
    %p281 = por %p279, %p280
    %p282 = scmp.ne.s32.totalorder %s273, %s274
    %p283 = scmp.eq.s32.totalorder %s32, 0
    %p284 = por %p282, %p283
    %p285 = scmp.ne.s32.totalorder %s273, %s274
    %p286 = scmp.eq.s32.totalorder %s33, 1
    %p287 = por %p285, %p286
    %p289 = scmp.ne.s32.totalorder %s274, %s288
    %p290 = scmp.eq.s32.totalorder %s33, 0
    %p291 = por %p289, %p290
    %s293 = sadd.s32 %s292, 1
    %p296 = scmp.eq.s32.totalorder %s27, 1
    %p297 = scmp.ne.s32.totalorder %s292, %s294
    %p298 = scmp.eq.s32.totalorder %s27, 0
    %p299 = por %p297, %p298
    %p300 = scmp.ne.s32.totalorder %s292, %s294
    %p301 = scmp.eq.s32.totalorder %s32, 1
    %p302 = por %p300, %p301
    %p303 = scmp.ne.s32.totalorder %s294, %s295
    %p304 = scmp.eq.s32.totalorder %s32, 0
    %p305 = por %p303, %p304
    %p306 = scmp.ne.s32.totalorder %s294, %s295
    %p307 = scmp.eq.s32.totalorder %s33, 1
    %p308 = por %p306, %p307
    %p310 = scmp.ne.s32.totalorder %s295, %s309
    %p311 = scmp.eq.s32.totalorder %s33, 0
    %p312 = por %p310, %p311
    %s314 = sadd.s32 %s313, 1
    %p317 = scmp.eq.s32.totalorder %s27, 1
    %p318 = scmp.ne.s32.totalorder %s313, %s315
    %p319 = scmp.eq.s32.totalorder %s27, 0
    %p320 = por %p318, %p319
    %p321 = scmp.ne.s32.totalorder %s313, %s315
    %p322 = scmp.eq.s32.totalorder %s32, 1
    %p323 = por %p321, %p322
    %p324 = scmp.ne.s32.totalorder %s315, %s316
    %p325 = scmp.eq.s32.totalorder %s32, 0
    %p326 = por %p324, %p325
    %p327 = scmp.ne.s32.totalorder %s315, %s316
    %p328 = scmp.eq.s32.totalorder %s33, 1
    %p329 = por %p327, %p328
    %p331 = scmp.ne.s32.totalorder %s316, %s330
    %p332 = scmp.eq.s32.totalorder %s33, 0
    %p333 = por %p331, %p332
    %s335 = sadd.s32 %s334, 1
    %p338 = scmp.eq.s32.totalorder %s27, 1
    %p339 = scmp.ne.s32.totalorder %s334, %s336
    %p340 = scmp.eq.s32.totalorder %s27, 0
    %p341 = por %p339, %p340
    %p342 = scmp.ne.s32.totalorder %s334, %s336
    %p343 = scmp.eq.s32.totalorder %s32, 1
    %p344 = por %p342, %p343
    %p345 = scmp.ne.s32.totalorder %s336, %s337
    %p346 = scmp.eq.s32.totalorder %s32, 0
    %p347 = por %p345, %p346
    %p348 = scmp.ne.s32.totalorder %s336, %s337
    %p349 = scmp.eq.s32.totalorder %s33, 1
    %p350 = por %p348, %p349
    %p352 = scmp.ne.s32.totalorder %s337, %s351
    %p353 = scmp.eq.s32.totalorder %s33, 0
    %p354 = por %p352, %p353
    %s356 = sadd.s32 %s355, 1
    %p359 = scmp.eq.s32.totalorder %s27, 1
    %p360 = scmp.ne.s32.totalorder %s355, %s357
    %p361 = scmp.eq.s32.totalorder %s27, 0
    %p362 = por %p360, %p361
    %p363 = scmp.ne.s32.totalorder %s355, %s357
    %p364 = scmp.eq.s32.totalorder %s32, 1
    %p365 = por %p363, %p364
    %p366 = scmp.ne.s32.totalorder %s357, %s358
    %p367 = scmp.eq.s32.totalorder %s32, 0
    %p368 = por %p366, %p367
    %p369 = scmp.ne.s32.totalorder %s357, %s358
    %p370 = scmp.eq.s32.totalorder %s33, 1
    %p371 = por %p369, %p370
    %p373 = scmp.ne.s32.totalorder %s358, %s372
    %p374 = scmp.eq.s32.totalorder %s33, 0
    %p375 = por %p373, %p374
    %s377 = sadd.s32 %s376, 1
    %p380 = scmp.eq.s32.totalorder %s27, 1
    %p381 = scmp.ne.s32.totalorder %s376, %s378
    %p382 = scmp.eq.s32.totalorder %s27, 0
    %p383 = por %p381, %p382
    %p384 = scmp.ne.s32.totalorder %s376, %s378
    %p385 = scmp.eq.s32.totalorder %s32, 1
    %p386 = por %p384, %p385
    %p387 = scmp.ne.s32.totalorder %s378, %s379
    %p388 = scmp.eq.s32.totalorder %s32, 0
    %p389 = por %p387, %p388
    %p390 = scmp.ne.s32.totalorder %s378, %s379
    %p391 = scmp.eq.s32.totalorder %s33, 1
    %p392 = por %p390, %p391
    %p394 = scmp.ne.s32.totalorder %s379, %s393
    %p395 = scmp.eq.s32.totalorder %s33, 0
    %p396 = por %p394, %p395
    %s398 = sadd.s32 %s397, 1
    %p401 = scmp.eq.s32.totalorder %s27, 1
    %p402 = scmp.ne.s32.totalorder %s397, %s399
    %p403 = scmp.eq.s32.totalorder %s27, 0
    %p404 = por %p402, %p403
    %p405 = scmp.ne.s32.totalorder %s397, %s399
    %p406 = scmp.eq.s32.totalorder %s32, 1
    %p407 = por %p405, %p406
    %p408 = scmp.ne.s32.totalorder %s399, %s400
    %p409 = scmp.eq.s32.totalorder %s32, 0
    %p410 = por %p408, %p409
    %p411 = scmp.ne.s32.totalorder %s399, %s400
    %p412 = scmp.eq.s32.totalorder %s33, 1
    %p413 = por %p411, %p412
    %p415 = scmp.ne.s32.totalorder %s400, %s414
    %p416 = scmp.eq.s32.totalorder %s33, 0
    %p417 = por %p415, %p416
    %s419 = sadd.s32 %s418, 1
    %p422 = scmp.eq.s32.totalorder %s27, 1
    %p423 = scmp.ne.s32.totalorder %s418, %s420
    %p424 = scmp.eq.s32.totalorder %s27, 0
    %p425 = por %p423, %p424
    %p426 = scmp.ne.s32.totalorder %s418, %s420
    %p427 = scmp.eq.s32.totalorder %s32, 1
    %p428 = por %p426, %p427
    %p429 = scmp.ne.s32.totalorder %s420, %s421
    %p430 = scmp.eq.s32.totalorder %s32, 0
    %p431 = por %p429, %p430
    %p432 = scmp.ne.s32.totalorder %s420, %s421
    %p433 = scmp.eq.s32.totalorder %s33, 1
    %p434 = por %p432, %p433
    %p436 = scmp.ne.s32.totalorder %s421, %s435
    %p437 = scmp.eq.s32.totalorder %s33, 0
    %p438 = por %p436, %p437
    %s440 = sadd.s32 %s439, 1
    %p443 = scmp.eq.s32.totalorder %s27, 1
    %p444 = scmp.ne.s32.totalorder %s439, %s441
    %p445 = scmp.eq.s32.totalorder %s27, 0
    %p446 = por %p444, %p445
    %p447 = scmp.ne.s32.totalorder %s439, %s441
    %p448 = scmp.eq.s32.totalorder %s32, 1
    %p449 = por %p447, %p448
    %p450 = scmp.ne.s32.totalorder %s441, %s442
    %p451 = scmp.eq.s32.totalorder %s32, 0
    %p452 = por %p450, %p451
    %p453 = scmp.ne.s32.totalorder %s441, %s442
    %p454 = scmp.eq.s32.totalorder %s33, 1
    %p455 = por %p453, %p454
    %p457 = scmp.ne.s32.totalorder %s442, %s456
    %p458 = scmp.eq.s32.totalorder %s33, 0
    %p459 = por %p457, %p458
    %s461 = sadd.s32 %s460, 1
    %p464 = scmp.eq.s32.totalorder %s27, 1
    %p465 = scmp.ne.s32.totalorder %s460, %s462
    %p466 = scmp.eq.s32.totalorder %s27, 0
    %p467 = por %p465, %p466
    %p468 = scmp.ne.s32.totalorder %s460, %s462
    %p469 = scmp.eq.s32.totalorder %s32, 1
    %p470 = por %p468, %p469
    %p471 = scmp.ne.s32.totalorder %s462, %s463
    %p472 = scmp.eq.s32.totalorder %s32, 0
    %p473 = por %p471, %p472
    %p474 = scmp.ne.s32.totalorder %s462, %s463
    %p475 = scmp.eq.s32.totalorder %s33, 1
    %p476 = por %p474, %p475
    %p478 = scmp.ne.s32.totalorder %s463, %s477
    %p479 = scmp.eq.s32.totalorder %s33, 0
    %p480 = por %p478, %p479
    %s481 = ssub.s32 %s27, %s34
    %p482 = scmp.eq.s32.totalorder %s481, 0
    %s484 = sadd.s32 %s483, 1
    %s485 = scalar_select %p482, %s483, %s484
    %p488 = pneg %p482
    %p489 = scmp.eq.s32.totalorder %s27, 1
    %p490 = por %p488, %p489
    %p491 = scmp.ne.s32.totalorder %s483, %s486
    %p492 = scmp.eq.s32.totalorder %s27, 0
    %p493 = por %p491, %p492
    %p494 = scmp.ne.s32.totalorder %s483, %s486
    %p495 = scmp.eq.s32.totalorder %s32, 1
    %p496 = por %p494, %p495
    %p497 = scmp.ne.s32.totalorder %s486, %s487
    %p498 = scmp.eq.s32.totalorder %s32, 0
    %p499 = por %p497, %p498
    %p500 = scmp.ne.s32.totalorder %s486, %s487
    %p501 = scmp.eq.s32.totalorder %s33, 1
    %p502 = por %p500, %p501
    %p504 = scmp.ne.s32.totalorder %s487, %s503
    %p505 = scmp.eq.s32.totalorder %s33, 0
    %p506 = por %p504, %p505
    %p507 = scmp.le.s32.totalorder 1, %s27
    %p508 = scmp.lt.s32.totalorder %s27, 3
    %p509 = pnand %p507, %p508
    %p510 = pneg %p509
    // Predicated region
    $region9: #{pssp_repr_forward.1} parent=5 // pred_check
      _
    $region10: #{pssp_repr_forward.1} parent=5 // pred_check_branch
      %512 = sbr.rel (%p509) target = $region12
    $region11: #{pssp_repr_forward.1} parent=5 // pred_region
      %s513 = ssub.s32 %s27, 1
      // Predicated region
      $region13: #{pssp_repr_forward.1} parent=11 // pred_check
        %p514 = pneg %p74
      $region14: #{pssp_repr_forward.1} parent=11 // pred_check_branch
        %516 = sbr.rel (%p514) target = $region16
      $region15: #{pssp_repr_forward.1} parent=11 // pred_region
        _
      $region16: #{pssp_repr_forward.1} parent=11 // pred_fallthru
        _
      // Predicated region
      $region17: #{pssp_repr_forward.1} parent=11 // pred_check
        %p517 = pneg %p95
      $region18: #{pssp_repr_forward.1} parent=11 // pred_check_branch
        %519 = sbr.rel (%p517) target = $region20
      $region19: #{pssp_repr_forward.1} parent=11 // pred_region
        _
      $region20: #{pssp_repr_forward.1} parent=11 // pred_fallthru
        _
      // Predicated region
      $region21: #{pssp_repr_forward.1} parent=11 // pred_check
        %p520 = pneg %p116
      $region22: #{pssp_repr_forward.1} parent=11 // pred_check_branch
        %522 = sbr.rel (%p520) target = $region24
      $region23: #{pssp_repr_forward.1} parent=11 // pred_region
        _
      $region24: #{pssp_repr_forward.1} parent=11 // pred_fallthru
        _
      // Predicated region
      $region25: #{pssp_repr_forward.1} parent=11 // pred_check
        %p523 = pneg %p137
      $region26: #{pssp_repr_forward.1} parent=11 // pred_check_branch
        %525 = sbr.rel (%p523) target = $region28
      $region27: #{pssp_repr_forward.1} parent=11 // pred_region
        _
      $region28: #{pssp_repr_forward.1} parent=11 // pred_fallthru
        _
      // Predicated region
      $region29: #{pssp_repr_forward.1} parent=11 // pred_check
        %p526 = pneg %p158
      $region30: #{pssp_repr_forward.1} parent=11 // pred_check_branch
        %528 = sbr.rel (%p526) target = $region32
      $region31: #{pssp_repr_forward.1} parent=11 // pred_region
        _
      $region32: #{pssp_repr_forward.1} parent=11 // pred_fallthru
        _
      // Predicated region
      $region33: #{pssp_repr_forward.1} parent=11 // pred_check
        %p529 = pneg %p179
      $region34: #{pssp_repr_forward.1} parent=11 // pred_check_branch
        %531 = sbr.rel (%p529) target = $region36
      $region35: #{pssp_repr_forward.1} parent=11 // pred_region
        _
      $region36: #{pssp_repr_forward.1} parent=11 // pred_fallthru
        _
      // Predicated region
      $region37: #{pssp_repr_forward.1} parent=11 // pred_check
        %p532 = pneg %p200
      $region38: #{pssp_repr_forward.1} parent=11 // pred_check_branch
        %534 = sbr.rel (%p532) target = $region40
      $region39: #{pssp_repr_forward.1} parent=11 // pred_region
        _
      $region40: #{pssp_repr_forward.1} parent=11 // pred_fallthru
        _
      // Predicated region
      $region41: #{pssp_repr_forward.1} parent=11 // pred_check
        %p535 = pneg %p221
      $region42: #{pssp_repr_forward.1} parent=11 // pred_check_branch
        %537 = sbr.rel (%p535) target = $region44
      $region43: #{pssp_repr_forward.1} parent=11 // pred_region
        _
      $region44: #{pssp_repr_forward.1} parent=11 // pred_fallthru
        _
      // Predicated region
      $region45: #{pssp_repr_forward.1} parent=11 // pred_check
        %p538 = pneg %p242
      $region46: #{pssp_repr_forward.1} parent=11 // pred_check_branch
        %540 = sbr.rel (%p538) target = $region48
      $region47: #{pssp_repr_forward.1} parent=11 // pred_region
        _
      $region48: #{pssp_repr_forward.1} parent=11 // pred_fallthru
        _
      // Predicated region
      $region49: #{pssp_repr_forward.1} parent=11 // pred_check
        %p541 = pneg %p263
      $region50: #{pssp_repr_forward.1} parent=11 // pred_check_branch
        %543 = sbr.rel (%p541) target = $region52
      $region51: #{pssp_repr_forward.1} parent=11 // pred_region
        _
      $region52: #{pssp_repr_forward.1} parent=11 // pred_fallthru
        _
      // Predicated region
      $region53: #{pssp_repr_forward.1} parent=11 // pred_check
        %p544 = pneg %p284
      $region54: #{pssp_repr_forward.1} parent=11 // pred_check_branch
        %546 = sbr.rel (%p544) target = $region56
      $region55: #{pssp_repr_forward.1} parent=11 // pred_region
        _
      $region56: #{pssp_repr_forward.1} parent=11 // pred_fallthru
        _
      // Predicated region
      $region57: #{pssp_repr_forward.1} parent=11 // pred_check
        %p547 = pneg %p305
      $region58: #{pssp_repr_forward.1} parent=11 // pred_check_branch
        %549 = sbr.rel (%p547) target = $region60
      $region59: #{pssp_repr_forward.1} parent=11 // pred_region
        _
      $region60: #{pssp_repr_forward.1} parent=11 // pred_fallthru
        _
      // Predicated region
      $region61: #{pssp_repr_forward.1} parent=11 // pred_check
        %p550 = pneg %p326
      $region62: #{pssp_repr_forward.1} parent=11 // pred_check_branch
        %552 = sbr.rel (%p550) target = $region64
      $region63: #{pssp_repr_forward.1} parent=11 // pred_region
        _
      $region64: #{pssp_repr_forward.1} parent=11 // pred_fallthru
        _
      // Predicated region
      $region65: #{pssp_repr_forward.1} parent=11 // pred_check
        %p553 = pneg %p347
      $region66: #{pssp_repr_forward.1} parent=11 // pred_check_branch
        %555 = sbr.rel (%p553) target = $region68
      $region67: #{pssp_repr_forward.1} parent=11 // pred_region
        _
      $region68: #{pssp_repr_forward.1} parent=11 // pred_fallthru
        _
      // Predicated region
      $region69: #{pssp_repr_forward.1} parent=11 // pred_check
        %p556 = pneg %p368
      $region70: #{pssp_repr_forward.1} parent=11 // pred_check_branch
        %558 = sbr.rel (%p556) target = $region72
      $region71: #{pssp_repr_forward.1} parent=11 // pred_region
        _
      $region72: #{pssp_repr_forward.1} parent=11 // pred_fallthru
        _
      // Predicated region
      $region73: #{pssp_repr_forward.1} parent=11 // pred_check
        %p559 = pneg %p389
      $region74: #{pssp_repr_forward.1} parent=11 // pred_check_branch
        %561 = sbr.rel (%p559) target = $region76
      $region75: #{pssp_repr_forward.1} parent=11 // pred_region
        _
      $region76: #{pssp_repr_forward.1} parent=11 // pred_fallthru
        _
      // Predicated region
      $region77: #{pssp_repr_forward.1} parent=11 // pred_check
        %p562 = pneg %p410
      $region78: #{pssp_repr_forward.1} parent=11 // pred_check_branch
        %564 = sbr.rel (%p562) target = $region80
      $region79: #{pssp_repr_forward.1} parent=11 // pred_region
        _
      $region80: #{pssp_repr_forward.1} parent=11 // pred_fallthru
        _
      // Predicated region
      $region81: #{pssp_repr_forward.1} parent=11 // pred_check
        %p565 = pneg %p431
      $region82: #{pssp_repr_forward.1} parent=11 // pred_check_branch
        %567 = sbr.rel (%p565) target = $region84
      $region83: #{pssp_repr_forward.1} parent=11 // pred_region
        _
      $region84: #{pssp_repr_forward.1} parent=11 // pred_fallthru
        _
      // Predicated region
      $region85: #{pssp_repr_forward.1} parent=11 // pred_check
        %p568 = pneg %p452
      $region86: #{pssp_repr_forward.1} parent=11 // pred_check_branch
        %570 = sbr.rel (%p568) target = $region88
      $region87: #{pssp_repr_forward.1} parent=11 // pred_region
        _
      $region88: #{pssp_repr_forward.1} parent=11 // pred_fallthru
        _
      // Predicated region
      $region89: #{pssp_repr_forward.1} parent=11 // pred_check
        %p571 = pneg %p473
      $region90: #{pssp_repr_forward.1} parent=11 // pred_check_branch
        %573 = sbr.rel (%p571) target = $region92
      $region91: #{pssp_repr_forward.1} parent=11 // pred_region
        _
      $region92: #{pssp_repr_forward.1} parent=11 // pred_fallthru
        _
    $region12: #{pssp_repr_forward.1} parent=5 // pred_fallthru
      _
    %p574 = scmp.lt.s32.totalorder %s27, 2
    // Predicated region
    $region93: #{pssp_repr_forward.1} parent=5 // pred_check
      %p575 = pneg %p574
    $region94: #{pssp_repr_forward.1} parent=5 // pred_check_branch
      %577 = sbr.rel (%p575) target = $region96
    $region95: #{pssp_repr_forward.1} parent=5 // pred_region
      // Predicated region
      $region97: #{pssp_repr_forward.1} parent=95 // pred_check
        %p578 = pneg %p47
      $region98: #{pssp_repr_forward.1} parent=95 // pred_check_branch
        %580 = sbr.rel (%p578) target = $region100
      $region99: #{pssp_repr_forward.1} parent=95 // pred_region
        %p581 = scmp.lt.s32.totalorder %s27, 1
        %s582 = scalar_select %p581, %s27, 1
        %s583 = smul.addr %s582, 2
        %s584 = smul.addr %s583, 8
        %s585 = scalar_lea.vmem %s0, %s584
      $region100: #{pssp_repr_forward.1} parent=95 // pred_fallthru
        _
    $region96: #{pssp_repr_forward.1} parent=5 // pred_fallthru
      _
    %p586 = scmp.le.s32.totalorder 1, %s27
    %p587 = scmp.lt.s32.totalorder %s27, 3
    %p588 = pnand %p586, %p587
    %p589 = pneg %p588
    // Predicated region
    $region101: #{pssp_repr_forward.1} parent=5 // pred_check
      _
    $region102: #{pssp_repr_forward.1} parent=5 // pred_check_branch
      %591 = sbr.rel (%p588) target = $region104
    $region103: #{pssp_repr_forward.1} parent=5 // pred_region
      %s592 = ssub.s32 %s27, 1
      %p593 = scmp.lt.s32.totalorder %s32, 1
      %s594 = scalar_select %p593, %s32, 1
      %s595 = smul.addr %s594, 2
      %s596 = smul.addr %s595, 8
      %s597 = scalar_lea.vmem %s0, %s596
      %p598 = pneg %p53
      %p599 = pneg %p50
      %p600 = pneg %p74
      %p601 = pneg %p71
      %p602 = pneg %p95
      %p603 = pneg %p92
      %p604 = pneg %p116
      %p605 = pneg %p113
      %p606 = pneg %p137
      %p607 = pneg %p134
      %p608 = pneg %p158
      %p609 = pneg %p155
      %p610 = pneg %p179
      %p611 = pneg %p176
      %p612 = pneg %p200
      %p613 = pneg %p197
      %p614 = pneg %p221
      %p615 = pneg %p218
      %p616 = pneg %p242
      %p617 = pneg %p239
      %p618 = pneg %p263
      %p619 = pneg %p260
      %p620 = pneg %p284
      %p621 = pneg %p281
      %p622 = pneg %p305
      %p623 = pneg %p302
      %p624 = pneg %p326
      %p625 = pneg %p323
      %p626 = pneg %p347
      %p627 = pneg %p344
      %p628 = pneg %p368
      %p629 = pneg %p365
      %p630 = pneg %p389
      %p631 = pneg %p386
      %p632 = pneg %p410
      %p633 = pneg %p407
      %p634 = pneg %p431
      %p635 = pneg %p428
      %p636 = pneg %p452
      %p637 = pneg %p449
      %p638 = pneg %p473
      %p639 = pneg %p470
      %p640 = pneg %p499
      %p641 = pneg %p496
      %p642 = scmp.lt.s32.totalorder %s32, 1
      %s643 = scalar_select %p642, %s32, 1
      %s644 = smul.addr %s643, 4
      %s645 = smul.addr %s644, 8
      %s646 = scalar_lea.vmem %s21, %s645
      %p647 = scmp.lt.s32.totalorder %s32, 1
      %s648 = scalar_select %p647, %s32, 1
      %s649 = smul.addr %s648, 2
      %s650 = smul.addr %s649, 8
      %s651 = scalar_lea.vmem %s0, %s650
      %p652 = scmp.lt.s32.totalorder %s32, 1
      %s653 = scalar_select %p652, %s32, 1
      %s654 = smul.addr %s653, 4
      %s655 = smul.addr %s654, 8
      %s656 = scalar_lea.vmem %s21, %s655
      %v657 = vld [vmem:[%s651] sm:$0xff]
      %v658 = vld [vmem:[%s651 + $0x8] sm:$0xff]
      %v659 = vld [vmem:[%s1] sm:$0xff]
      %v660 = vld [vmem:[%s1 + $0x8] sm:$0xff]
      %vm661 = vcmask 130048
      %v663 = vsel %vm661, %v659, 0
      %v666 = vsel %vm661, %v660, 0
      %668 = vmatpush.msra.mxu0 0.0
      %669 = vmatpush.msra.mxu0 0.0
      %670 = vmatpush.msra.mxu0 0.0
      %671 = vmatpush.msra.mxu0 0.0
      %672 = vmatpush.msra.mxu0 0.0
      %673 = vmatpush.msra.mxu0 0.0
      %674 = vmatpush.msra.mxu0 0.0
      %675 = vmatpush.msra.mxu0 0.0
      %676 = vmatpush.msra.mxu0 0.0
      %677 = vmatpush.msra.mxu0 0.0
      %678 = vmatpush.msra.mxu0 0.0
      %679 = vmatpush.msra.mxu0 0.0
      %680 = vmatpush.msra.mxu0 0.0
      %681 = vmatpush.msra.mxu0 0.0
      %682 = vmatpush.msra.mxu0 %v658
      %683 = vmatpush.msra.mxu0 %v657
      %684 = vmatmul.f32.gmra.mxu0 %v663
      %v685 = vpop.f32.mrf.mxu0
      %v686 = vadd.f32 0.0, %v685
      %687 = vmatmul.f32.gmra.mxu0 %v666
      %v688 = vpop.f32.mrf.mxu0
      %v689 = vadd.f32 0.0, %v688
      %690 = vdwg.mxu0
      %v691 = vmul.f32 %v686, 0.999995
      %v692 = vmul.f32 %v689, 0.999995
      %v693 = vmax.f32 %v691, 0.0
      %v694 = vmax.f32 %v692, 0.0
      %695 = vst.msk [vmem:[#allocation2] sm:$0xff] %vm661, 0.0
      %696 = vst.msk [vmem:[#allocation2 + $0x8] sm:$0xff] %vm661, 0.0
      %697 = vst.msk [vmem:[#allocation2 + $0x10] sm:$0xff] %vm661, 0.0
      %698 = vst.msk [vmem:[#allocation2 + $0x18] sm:$0xff] %vm661, 0.0
      %699 = vst.msk [vmem:[#allocation2 + $0x20] sm:$0xff] %vm661, 0.0
      %700 = vst.msk [vmem:[#allocation2 + $0x28] sm:$0xff] %vm661, 0.0
      %703 = vrot.lane.b32.xlu0 %v693, 1
      %v704 = vpop.permute.xlu0 %703
      %705 = vrot.lane.b32.xlu0 %v694, 1
      %v706 = vpop.permute.xlu0 %705
      %vm709 = vcmask 130056
      %710 = vst.msk [vmem:[#allocation2] sm:$0xff] %vm709, %v704
      %711 = vst.msk [vmem:[#allocation2 + $0x8] sm:$0xff] %vm709, %v706
      %712 = vst.msk [vmem:[#allocation2 + $0x10] sm:$0xff] %vm661, %v693
      %713 = vst.msk [vmem:[#allocation2 + $0x18] sm:$0xff] %vm661, %v694
      %714 = vrot.lane.b32.xlu0 %v693, 127
      %v715 = vpop.permute.xlu0 %714
      %716 = vrot.lane.b32.xlu0 %v694, 127
      %v717 = vpop.permute.xlu0 %716
      %vm720 = vcmask 121856
      %721 = vst.msk [vmem:[#allocation2 + $0x20] sm:$0xff] %vm720, %v715
      %722 = vst.msk [vmem:[#allocation2 + $0x28] sm:$0xff] %vm720, %v717
      %v723 = vld [vmem:[%s2] sm:$0xff]
      %v724 = vld [vmem:[%s2 + $0x8] sm:$0xff]
      %v725 = vld [vmem:[#allocation2] sm:$0xff]
      %v726 = vld [vmem:[#allocation2 + $0x8] sm:$0xff]
      %v727 = vld [vmem:[#allocation2 + $0x10] sm:$0xff]
      %v728 = vld [vmem:[#allocation2 + $0x18] sm:$0xff]
      %v729 = vld [vmem:[#allocation2 + $0x20] sm:$0xff]
      %v730 = vld [vmem:[#allocation2 + $0x28] sm:$0xff]
      %vm731 = vcmask 392192
      %v733 = vsel %vm731, %v723, 0
      %v736 = vsel %vm731, %v724, 0
      %738 = vmatpush.msra.mxu0 0.0
      %739 = vmatpush.msra.mxu0 0.0
      %740 = vmatpush.msra.mxu0 0.0
      %741 = vmatpush.msra.mxu0 0.0
      %742 = vmatpush.msra.mxu0 0.0
      %743 = vmatpush.msra.mxu0 0.0
      %744 = vmatpush.msra.mxu0 0.0
      %745 = vmatpush.msra.mxu0 0.0
      %746 = vmatpush.msra.mxu0 0.0
      %747 = vmatpush.msra.mxu0 0.0
      %748 = vmatpush.msra.mxu0 %v730
      %749 = vmatpush.msra.mxu0 %v729
      %750 = vmatpush.msra.mxu0 %v728
      %751 = vmatpush.msra.mxu0 %v727
      %752 = vmatpush.msra.mxu0 %v726
      %753 = vmatpush.msra.mxu0 %v725
      %754 = vmatmul.f32.gmra.mxu0 %v733
      %v755 = vpop.f32.mrf.mxu0
      %v756 = vadd.f32 0.0, %v755
      %757 = vmatmul.f32.gmra.mxu0 %v736
      %v758 = vpop.f32.mrf.mxu0
      %v759 = vadd.f32 0.0, %v758
      %760 = vdwg.mxu0
      %v761 = vmul.f32 %v756, 0.999995
      %v762 = vmul.f32 %v759, 0.999995
      %v763 = vmax.f32 %v761, 0.0
      %v764 = vmax.f32 %v762, 0.0
      %765 = vst.msk [vmem:[#allocation2] sm:$0xff] %vm661, 0.0
      %766 = vst.msk [vmem:[#allocation2 + $0x8] sm:$0xff] %vm661, 0.0
      %767 = vst.msk [vmem:[#allocation2 + $0x10] sm:$0xff] %vm661, 0.0
      %768 = vst.msk [vmem:[#allocation2 + $0x18] sm:$0xff] %vm661, 0.0
      %769 = vst.msk [vmem:[#allocation2 + $0x20] sm:$0xff] %vm661, 0.0
      %770 = vst.msk [vmem:[#allocation2 + $0x28] sm:$0xff] %vm661, 0.0
      %773 = vrot.lane.b32.xlu0 %v763, 1
      %v774 = vpop.permute.xlu0 %773
      %775 = vrot.lane.b32.xlu0 %v764, 1
      %v776 = vpop.permute.xlu0 %775
      %779 = vst.msk [vmem:[#allocation2] sm:$0xff] %vm709, %v774
      %780 = vst.msk [vmem:[#allocation2 + $0x8] sm:$0xff] %vm709, %v776
      %781 = vst.msk [vmem:[#allocation2 + $0x10] sm:$0xff] %vm661, %v763
      %782 = vst.msk [vmem:[#allocation2 + $0x18] sm:$0xff] %vm661, %v764
      %783 = vrot.lane.b32.xlu0 %v763, 127
      %v784 = vpop.permute.xlu0 %783
      %785 = vrot.lane.b32.xlu0 %v764, 127
      %v786 = vpop.permute.xlu0 %785
      %789 = vst.msk [vmem:[#allocation2 + $0x20] sm:$0xff] %vm720, %v784
      %790 = vst.msk [vmem:[#allocation2 + $0x28] sm:$0xff] %vm720, %v786
      %v791 = vld [vmem:[%s3] sm:$0xff]
      %v792 = vld [vmem:[#allocation2] sm:$0xff]
      %v793 = vld [vmem:[#allocation2 + $0x8] sm:$0xff]
      %v794 = vld [vmem:[#allocation2 + $0x10] sm:$0xff]
      %v795 = vld [vmem:[#allocation2 + $0x18] sm:$0xff]
      %v796 = vld [vmem:[#allocation2 + $0x20] sm:$0xff]
      %v797 = vld [vmem:[#allocation2 + $0x28] sm:$0xff]
      %v799 = vsel %vm731, %v791, 0
      %801 = vmatpush.msra.mxu0 0.0
      %802 = vmatpush.msra.mxu0 0.0
      %803 = vmatpush.msra.mxu0 0.0
      %804 = vmatpush.msra.mxu0 0.0
      %805 = vmatpush.msra.mxu0 0.0
      %806 = vmatpush.msra.mxu0 0.0
      %807 = vmatpush.msra.mxu0 0.0
      %808 = vmatpush.msra.mxu0 0.0
      %809 = vmatpush.msra.mxu0 0.0
      %810 = vmatpush.msra.mxu0 0.0
      %811 = vmatpush.msra.mxu0 %v797
      %812 = vmatpush.msra.mxu0 %v796
      %813 = vmatpush.msra.mxu0 %v795
      %814 = vmatpush.msra.mxu0 %v794
      %815 = vmatpush.msra.mxu0 %v793
      %816 = vmatpush.msra.mxu0 %v792
      %817 = vmatmul.f32.gmra.mxu0 %v799
      %v818 = vpop.f32.mrf.mxu0
      %v819 = vadd.f32 0.0, %v818
      %820 = vdwg.mxu0
      %v821 = vmul.f32 %v819, 0.999995
      %v822 = vmax.f32 %v821, 0.0
      %823 = vst.msk [vmem:[#allocation2] sm:$0xff] %vm661, 0.0
      %824 = vst.msk [vmem:[#allocation2 + $0x8] sm:$0xff] %vm661, 0.0
      %825 = vst.msk [vmem:[#allocation2 + $0x10] sm:$0xff] %vm661, 0.0
      %827 = vrot.lane.b32.xlu0 %v822, 1
      %v828 = vpop.permute.xlu0 %827
      %830 = vst.msk [vmem:[#allocation2] sm:$0xff] %vm709, %v828
      %831 = vst.msk [vmem:[#allocation2 + $0x8] sm:$0xff] %vm661, %v822
      %832 = vrot.lane.b32.xlu0 %v822, 127
      %v833 = vpop.permute.xlu0 %832
      %835 = vst.msk [vmem:[#allocation2 + $0x10] sm:$0xff] %vm720, %v833
      %v836 = vld [vmem:[%s4] sm:$0xff]
      %v837 = vld [vmem:[#allocation2] sm:$0xff]
      %v838 = vld [vmem:[#allocation2 + $0x8] sm:$0xff]
      %v839 = vld [vmem:[#allocation2 + $0x10] sm:$0xff]
      %vm840 = vcmask 195584
      %v842 = vsel %vm840, %v836, 0
      %844 = vmatpush.msra.mxu0 0.0
      %845 = vmatpush.msra.mxu0 0.0
      %846 = vmatpush.msra.mxu0 0.0
      %847 = vmatpush.msra.mxu0 0.0
      %848 = vmatpush.msra.mxu0 0.0
      %849 = vmatpush.msra.mxu0 0.0
      %850 = vmatpush.msra.mxu0 0.0
      %851 = vmatpush.msra.mxu0 0.0
      %852 = vmatpush.msra.mxu0 0.0
      %853 = vmatpush.msra.mxu0 0.0
      %854 = vmatpush.msra.mxu0 0.0
      %855 = vmatpush.msra.mxu0 0.0
      %856 = vmatpush.msra.mxu0 0.0
      %857 = vmatpush.msra.mxu0 %v839
      %858 = vmatpush.msra.mxu0 %v838
      %859 = vmatpush.msra.mxu0 %v837
      %860 = vmatmul.f32.gmra.mxu0 %v842
      %v861 = vpop.f32.mrf.mxu0
      %v862 = vadd.f32 0.0, %v861
      %863 = vdwg.mxu0
      %v864 = vmul.f32 %v862, 0.999995
      %v865 = vmax.f32 %v864, 0.0
      %v866 = vld [vmem:[%s5] sm:$0xff]
      %v868 = vsel %vm661, %v866, 0
      %870 = vmatpush.msra.mxu0 0.0
      %871 = vmatpush.msra.mxu0 0.0
      %872 = vmatpush.msra.mxu0 0.0
      %873 = vmatpush.msra.mxu0 0.0
      %874 = vmatpush.msra.mxu0 0.0
      %875 = vmatpush.msra.mxu0 0.0
      %876 = vmatpush.msra.mxu0 0.0
      %877 = vmatpush.msra.mxu0 0.0
      %878 = vmatpush.msra.mxu0 0.0
      %879 = vmatpush.msra.mxu0 0.0
      %880 = vmatpush.msra.mxu0 0.0
      %881 = vmatpush.msra.mxu0 0.0
      %882 = vmatpush.msra.mxu0 0.0
      %883 = vmatpush.msra.mxu0 0.0
      %884 = vmatpush.msra.mxu0 %v764
      %885 = vmatpush.msra.mxu0 %v763
      %886 = vmatmul.f32.gmra.mxu0 %v868
      %v887 = vpop.f32.mrf.mxu0
      %v888 = vadd.f32 0.0, %v887
      %889 = vdwg.mxu0
      %v890 = vmul.f32 %v888, 0.999995
      %v891 = vmax.f32 %v890, 0.0
      %892 = vst.msk [vmem:[#allocation2] sm:$0xff] %vm661, 0.0
      %893 = vst.msk [vmem:[#allocation2 + $0x8] sm:$0xff] %vm661, 0.0
      %895 = vrot.lane.b32.xlu0 %v891, 1
      %v896 = vpop.permute.xlu0 %895
      %898 = vst.msk [vmem:[#allocation2] sm:$0xff] %vm709, %v896
      %899 = vst.msk [vmem:[#allocation2 + $0x8] sm:$0xff] %vm661, %v891
      %v900 = vld [vmem:[%s6] sm:$0xf]
      %v901 = vld [vmem:[#allocation2] sm:$0xff]
      %v902 = vld [vmem:[#allocation2 + $0x8] sm:$0xff]
      %v903 = vld [vmem:[%s7] sm:$0xf]
      %905 = vset.pattern.permute.xlu0 0
      %906 = vperm.xlu0 %905, %v903
      %v907 = vpop.permute.xlu0 %906
      %v910 = vsel %vm661, %v900, 0
      %912 = vmatpush.msra.mxu0 0.0
      %913 = vmatpush.msra.mxu0 0.0
      %914 = vmatpush.msra.mxu0 0.0
      %915 = vmatpush.msra.mxu0 0.0
      %916 = vmatpush.msra.mxu0 0.0
      %917 = vmatpush.msra.mxu0 0.0
      %918 = vmatpush.msra.mxu0 0.0
      %919 = vmatpush.msra.mxu0 0.0
      %920 = vmatpush.msra.mxu0 0.0
      %921 = vmatpush.msra.mxu0 0.0
      %922 = vmatpush.msra.mxu0 0.0
      %923 = vmatpush.msra.mxu0 0.0
      %924 = vmatpush.msra.mxu0 0.0
      %925 = vmatpush.msra.mxu0 0.0
      %926 = vmatpush.msra.mxu0 %v902
      %927 = vmatpush.msra.mxu0 %v901
      %928 = vmatmul.f32.gmra.mxu0 %v910
      %v929 = vpop.f32.mrf.mxu0
      %v930 = vadd.f32 %v907, %v929
      %931 = vdwg.mxu0
      %v932 = vmax.f32 %v930, 0.0
      %933 = vst.msk [vmem:[#allocation2] sm:$0xff] %vm661, 0.0
      %934 = vst.msk [vmem:[#allocation2 + $0x8] sm:$0xff] %vm661, 0.0
      %936 = vrot.lane.b32.xlu0 %v932, 1
      %v937 = vpop.permute.xlu0 %936
      %vm939 = vcmask 125960
      %940 = vst.msk [vmem:[#allocation2] sm:$0xf] %vm939, %v937
      %vm941 = vcmask 125952
      %942 = vst.msk [vmem:[#allocation2 + $0x8] sm:$0xf] %vm941, %v932
      %v943 = vld [vmem:[%s8] sm:$0xf]
      %v944 = vld [vmem:[#allocation2] sm:$0xff]
      %v945 = vld [vmem:[#allocation2 + $0x8] sm:$0xff]
      %v946 = vld [vmem:[%s9] sm:$0xf]
      %948 = vset.pattern.permute.xlu0 0
      %949 = vperm.xlu0 %948, %v946
      %v950 = vpop.permute.xlu0 %949
      %v953 = vsel %vm661, %v943, 0
      %955 = vmatpush.msra.mxu0 0.0
      %956 = vmatpush.msra.mxu0 0.0
      %957 = vmatpush.msra.mxu0 0.0
      %958 = vmatpush.msra.mxu0 0.0
      %959 = vmatpush.msra.mxu0 0.0
      %960 = vmatpush.msra.mxu0 0.0
      %961 = vmatpush.msra.mxu0 0.0
      %962 = vmatpush.msra.mxu0 0.0
      %963 = vmatpush.msra.mxu0 0.0
      %964 = vmatpush.msra.mxu0 0.0
      %965 = vmatpush.msra.mxu0 0.0
      %966 = vmatpush.msra.mxu0 0.0
      %967 = vmatpush.msra.mxu0 0.0
      %968 = vmatpush.msra.mxu0 0.0
      %969 = vmatpush.msra.mxu0 %v945
      %970 = vmatpush.msra.mxu0 %v944
      %971 = vmatmul.f32.gmra.mxu0 %v953
      %v972 = vpop.f32.mrf.mxu0
      %v973 = vadd.f32 %v950, %v972
      %974 = vdwg.mxu0
      %v975 = vmax.f32 %v973, 0.0
      %v976 = vld [vmem:[%s10] sm:$0xf]
      %v977 = vld [vmem:[%s11] sm:$0xf]
      %979 = vset.pattern.permute.xlu0 0
      %980 = vperm.xlu0 %979, %v977
      %v981 = vpop.permute.xlu0 %980
      %vm983 = vcmask 64512
      %v985 = vsel %vm983, %v976, 0
      %987 = vmatpush.msra.mxu0 0.0
      %988 = vmatpush.msra.mxu0 0.0
      %989 = vmatpush.msra.mxu0 0.0
      %990 = vmatpush.msra.mxu0 0.0
      %991 = vmatpush.msra.mxu0 0.0
      %992 = vmatpush.msra.mxu0 0.0
      %993 = vmatpush.msra.mxu0 0.0
      %994 = vmatpush.msra.mxu0 0.0
      %995 = vmatpush.msra.mxu0 0.0
      %996 = vmatpush.msra.mxu0 0.0
      %997 = vmatpush.msra.mxu0 0.0
      %998 = vmatpush.msra.mxu0 0.0
      %999 = vmatpush.msra.mxu0 0.0
      %1000 = vmatpush.msra.mxu0 0.0
      %1001 = vmatpush.msra.mxu0 0.0
      %1002 = vmatpush.msra.mxu0 %v891
      %1003 = vmatmul.f32.gmra.mxu0 %v985
      %v1004 = vpop.f32.mrf.mxu0
      %v1005 = vadd.f32 %v981, %v1004
      %1006 = vdwg.mxu0
      %v1007 = vadd.f32 %v975, %v1005
      %v1008 = vmax.f32 %v1007, 0.0
      %1009 = vst.msk [vmem:[#allocation2] sm:$0xff] %vm661, 0.0
      %1010 = vst.msk [vmem:[#allocation2 + $0x8] sm:$0xff] %vm661, 0.0
      %1012 = vrot.lane.b32.xlu0 %v1008, 2
      %v1013 = vpop.permute.xlu0 %1012
      %vm1015 = vcmask 125968
      %1016 = vst.msk [vmem:[#allocation2] sm:$0xf] %vm1015, %v1013
      %1017 = vst.msk [vmem:[#allocation2 + $0x8] sm:$0xf] %vm941, %v1008
      %v1018 = vld [vmem:[%s12] sm:$0x3]
      %v1019 = vld [vmem:[#allocation2] sm:$0xff]
      %v1020 = vld [vmem:[#allocation2 + $0x8] sm:$0xff]
      %v1021 = vld [vmem:[%s13] sm:$0x3]
      %1023 = vset.pattern.permute.xlu0 0
      %1024 = vperm.xlu0 %1023, %v1021
      %v1025 = vpop.permute.xlu0 %1024
      %v1028 = vsel %vm661, %v1018, 0
      %1030 = vmatpush.msra.mxu0 0.0
      %1031 = vmatpush.msra.mxu0 0.0
      %1032 = vmatpush.msra.mxu0 0.0
      %1033 = vmatpush.msra.mxu0 0.0
      %1034 = vmatpush.msra.mxu0 0.0
      %1035 = vmatpush.msra.mxu0 0.0
      %1036 = vmatpush.msra.mxu0 0.0
      %1037 = vmatpush.msra.mxu0 0.0
      %1038 = vmatpush.msra.mxu0 0.0
      %1039 = vmatpush.msra.mxu0 0.0
      %1040 = vmatpush.msra.mxu0 0.0
      %1041 = vmatpush.msra.mxu0 0.0
      %1042 = vmatpush.msra.mxu0 0.0
      %1043 = vmatpush.msra.mxu0 0.0
      %1044 = vmatpush.msra.mxu0 %v1020
      %1045 = vmatpush.msra.mxu0 %v1019
      %1046 = vmatmul.f32.gmra.mxu0 %v1028
      %v1047 = vpop.f32.mrf.mxu0
      %v1048 = vadd.f32 %v1025, %v1047
      %1049 = vdwg.mxu0
      %v1050 = vmax.f32 %v1048, 0.0
      %1051 = vst.msk [vmem:[#allocation2] sm:$0xff] %vm661, 0.0
      %1052 = vst.msk [vmem:[#allocation2 + $0x8] sm:$0xff] %vm661, 0.0
      %1054 = vrot.lane.b32.xlu0 %v1050, 2
      %v1055 = vpop.permute.xlu0 %1054
      %vm1057 = vcmask 123920
      %1058 = vst.msk [vmem:[#allocation2] sm:$0x3] %vm1057, %v1055
      %vm1059 = vcmask 123904
      %1060 = vst.msk [vmem:[#allocation2 + $0x8] sm:$0x3] %vm1059, %v1050
      %v1061 = vld [vmem:[%s14] sm:$0x3]
      %v1062 = vld [vmem:[#allocation2] sm:$0xff]
      %v1063 = vld [vmem:[#allocation2 + $0x8] sm:$0xff]
      %v1064 = vld [vmem:[%s15] sm:$0x3]
      %1066 = vset.pattern.permute.xlu0 0
      %1067 = vperm.xlu0 %1066, %v1064
      %v1068 = vpop.permute.xlu0 %1067
      %v1071 = vsel %vm661, %v1061, 0
      %1073 = vmatpush.msra.mxu0 0.0
      %1074 = vmatpush.msra.mxu0 0.0
      %1075 = vmatpush.msra.mxu0 0.0
      %1076 = vmatpush.msra.mxu0 0.0
      %1077 = vmatpush.msra.mxu0 0.0
      %1078 = vmatpush.msra.mxu0 0.0
      %1079 = vmatpush.msra.mxu0 0.0
      %1080 = vmatpush.msra.mxu0 0.0
      %1081 = vmatpush.msra.mxu0 0.0
      %1082 = vmatpush.msra.mxu0 0.0
      %1083 = vmatpush.msra.mxu0 0.0
      %1084 = vmatpush.msra.mxu0 0.0
      %1085 = vmatpush.msra.mxu0 0.0
      %1086 = vmatpush.msra.mxu0 0.0
      %1087 = vmatpush.msra.mxu0 %v1063
      %1088 = vmatpush.msra.mxu0 %v1062
      %1089 = vmatmul.f32.gmra.mxu0 %v1071
      %v1090 = vpop.f32.mrf.mxu0
      %v1091 = vadd.f32 %v1068, %v1090
      %1092 = vdwg.mxu0
      %v1093 = vmax.f32 %v1091, 0.0
      %v1094 = vld [vmem:[%s16] sm:$0x3]
      %v1095 = vld [vmem:[%s17] sm:$0x3]
      %1097 = vset.pattern.permute.xlu0 0
      %1098 = vperm.xlu0 %1097, %v1095
      %v1099 = vpop.permute.xlu0 %1098
      %vm1101 = vcmask 31744
      %v1103 = vsel %vm1101, %v1094, 0
      %vm1105 = vcmask 1043456
      %v1106 = vsel %vm1105, %v1008, 0
      %1108 = vmatpush.msra.mxu0 0.0
      %1109 = vmatpush.msra.mxu0 0.0
      %1110 = vmatpush.msra.mxu0 0.0
      %1111 = vmatpush.msra.mxu0 0.0
      %1112 = vmatpush.msra.mxu0 0.0
      %1113 = vmatpush.msra.mxu0 0.0
      %1114 = vmatpush.msra.mxu0 0.0
      %1115 = vmatpush.msra.mxu0 0.0
      %1116 = vmatpush.msra.mxu0 0.0
      %1117 = vmatpush.msra.mxu0 0.0
      %1118 = vmatpush.msra.mxu0 0.0
      %1119 = vmatpush.msra.mxu0 0.0
      %1120 = vmatpush.msra.mxu0 0.0
      %1121 = vmatpush.msra.mxu0 0.0
      %1122 = vmatpush.msra.mxu0 0.0
      %1123 = vmatpush.msra.mxu0 %v1106
      %1124 = vmatmul.f32.gmra.mxu0 %v1103
      %v1125 = vpop.f32.mrf.mxu0
      %v1126 = vadd.f32 %v1099, %v1125
      %1127 = vdwg.mxu0
      %v1128 = vadd.f32 %v1093, %v1126
      %v1129 = vmax.f32 %v1128, 0.0
      %v1130 = vld [vmem:[%s18] sm:$0xff]
      %vm1131 = vcmask 15360
      %v1133 = vsel %vm1131, %v1130, 0
      %vm1135 = vcmask 1041408
      %v1137 = vsel %vm1135, %v1129, 0
      %1139 = vmatpush.msra.mxu0 0.0
      %1140 = vmatpush.msra.mxu0 0.0
      %1141 = vmatpush.msra.mxu0 0.0
      %1142 = vmatpush.msra.mxu0 0.0
      %1143 = vmatpush.msra.mxu0 0.0
      %1144 = vmatpush.msra.mxu0 0.0
      %1145 = vmatpush.msra.mxu0 0.0
      %1146 = vmatpush.msra.mxu0 0.0
      %1147 = vmatpush.msra.mxu0 0.0
      %1148 = vmatpush.msra.mxu0 0.0
      %1149 = vmatpush.msra.mxu0 0.0
      %1150 = vmatpush.msra.mxu0 0.0
      %1151 = vmatpush.msra.mxu0 0.0
      %1152 = vmatpush.msra.mxu0 0.0
      %1153 = vmatpush.msra.mxu0 0.0
      %1154 = vmatpush.msra.mxu0 %v1137
      %1155 = vmatmul.f32.gmra.mxu0 %v1133
      %v1156 = vpop.f32.mrf.mxu0
      %v1157 = vadd.f32 0.0, %v1156
      %1158 = vdwg.mxu0
      %v1159 = vmul.f32 %v1157, 0.999995
      %v1160 = vmax.f32 %v1159, 0.0
      %1161 = vst.msk [vmem:[#allocation2] sm:$0xff] %vm661, %v865
      %1162 = vst.msk [vmem:[#allocation2 + $0x8] sm:$0xff] %vm661, %v1160
      %v1163 = vld [vmem:[#allocation2] sm:$0xff]
      %v1164 = vld [vmem:[#allocation2 + $0x8] sm:$0xff]
      %v1165 = vmul.f32 %v1163, 0.999995
      %v1166 = vmul.f32 %v1164, 0.999995
      %v1167 = vadd.f32 %v1165, 3.0
      %v1168 = vadd.f32 %v1166, 3.0
      %v1169 = vmax.f32 %v1167, 0.0
      %v1170 = vmax.f32 %v1168, 0.0
      %v1171 = vmin.f32 %v1169, 6.0
      %v1172 = vmin.f32 %v1170, 6.0
      %v1173 = vmul.f32 %v1165, %v1171
      %v1174 = vmul.f32 %v1166, %v1172
      %v1175 = vmul.f32 %v1173, 0.16666667
      %v1176 = vmul.f32 %v1174, 0.16666667
      %v1177 = vadd.f32 %v1175, %v657
      %v1178 = vadd.f32 %v1176, %v658
      %1179 = vst.msk [vmem:[#allocation2] sm:$0xff] %vm661, 0.0
      %1180 = vst.msk [vmem:[#allocation2 + $0x8] sm:$0xff] %vm661, 0.0
      %1181 = vst.msk [vmem:[#allocation2 + $0x10] sm:$0xff] %vm661, 0.0
      %1182 = vst.msk [vmem:[#allocation2 + $0x18] sm:$0xff] %vm661, 0.0
      %1183 = vst.msk [vmem:[#allocation2 + $0x20] sm:$0xff] %vm661, 0.0
      %1184 = vst.msk [vmem:[#allocation2 + $0x28] sm:$0xff] %vm661, 0.0
      %1185 = vst.msk [vmem:[#allocation2 + $0x30] sm:$0xff] %vm661, 0.0
      %1186 = vst.msk [vmem:[#allocation2 + $0x38] sm:$0xff] %vm661, 0.0
      %1187 = vst.msk [vmem:[#allocation2 + $0x40] sm:$0xff] %vm661, 0.0
      %1188 = vst.msk [vmem:[#allocation2 + $0x48] sm:$0xff] %vm661, 0.0
      %1189 = vst.msk [vmem:[#allocation2 + $0x50] sm:$0xff] %vm661, 0.0
      %1190 = vst.msk [vmem:[#allocation2 + $0x58] sm:$0xff] %vm661, 0.0
      %1191 = vst.msk [vmem:[#allocation2 + $0x60] sm:$0xff] %vm661, 0.0
      %1192 = vst.msk [vmem:[#allocation2 + $0x68] sm:$0xff] %vm661, 0.0
      %1193 = vst.msk [vmem:[#allocation2 + $0x70] sm:$0xff] %vm661, 0.0
      %1194 = vst.msk [vmem:[#allocation2 + $0x78] sm:$0xff] %vm661, 0.0
      %1195 = vst.msk [vmem:[#allocation2 + $0x80] sm:$0xff] %vm661, 0.0
      %1196 = vst.msk [vmem:[#allocation2 + $0x88] sm:$0xff] %vm661, 0.0
      %1199 = vrot.lane.b32.xlu0 %v1177, 4
      %v1200 = vpop.permute.xlu0 %1199
      %1201 = vrot.lane.b32.xlu0 %v1178, 4
      %v1202 = vpop.permute.xlu0 %1201
      %vm1205 = vcmask 130080
      %1206 = vst.msk [vmem:[#allocation2] sm:$0xff] %vm1205, %v1200
      %1207 = vst.msk [vmem:[#allocation2 + $0x8] sm:$0xff] %vm1205, %v1202
      %1208 = vrot.lane.b32.xlu0 %v1177, 3
      %v1209 = vpop.permute.xlu0 %1208
      %1210 = vrot.lane.b32.xlu0 %v1178, 3
      %v1211 = vpop.permute.xlu0 %1210
      %vm1214 = vcmask 130072
      %1215 = vst.msk [vmem:[#allocation2 + $0x10] sm:$0xff] %vm1214, %v1209
      %1216 = vst.msk [vmem:[#allocation2 + $0x18] sm:$0xff] %vm1214, %v1211
      %1217 = vrot.lane.b32.xlu0 %v1177, 2
      %v1218 = vpop.permute.xlu0 %1217
      %1219 = vrot.lane.b32.xlu0 %v1178, 2
      %v1220 = vpop.permute.xlu0 %1219
      %vm1223 = vcmask 130064
      %1224 = vst.msk [vmem:[#allocation2 + $0x20] sm:$0xff] %vm1223, %v1218
      %1225 = vst.msk [vmem:[#allocation2 + $0x28] sm:$0xff] %vm1223, %v1220
      %1226 = vrot.lane.b32.xlu0 %v1177, 1
      %v1227 = vpop.permute.xlu0 %1226
      %1228 = vrot.lane.b32.xlu0 %v1178, 1
      %v1229 = vpop.permute.xlu0 %1228
      %1232 = vst.msk [vmem:[#allocation2 + $0x30] sm:$0xff] %vm709, %v1227
      %1233 = vst.msk [vmem:[#allocation2 + $0x38] sm:$0xff] %vm709, %v1229
      %1234 = vst.msk [vmem:[#allocation2 + $0x40] sm:$0xff] %vm661, %v1177
      %1235 = vst.msk [vmem:[#allocation2 + $0x48] sm:$0xff] %vm661, %v1178
      %1236 = vrot.lane.b32.xlu0 %v1177, 127
      %v1237 = vpop.permute.xlu0 %1236
      %1238 = vrot.lane.b32.xlu0 %v1178, 127
      %v1239 = vpop.permute.xlu0 %1238
      %1242 = vst.msk [vmem:[#allocation2 + $0x50] sm:$0xff] %vm720, %v1237
      %1243 = vst.msk [vmem:[#allocation2 + $0x58] sm:$0xff] %vm720, %v1239
      %1244 = vrot.lane.b32.xlu0 %v1177, 126
      %v1245 = vpop.permute.xlu0 %1244
      %1246 = vrot.lane.b32.xlu0 %v1178, 126
      %v1247 = vpop.permute.xlu0 %1246
      %vm1250 = vcmask 113664
      %1251 = vst.msk [vmem:[#allocation2 + $0x60] sm:$0xff] %vm1250, %v1245
      %1252 = vst.msk [vmem:[#allocation2 + $0x68] sm:$0xff] %vm1250, %v1247
      %1253 = vrot.lane.b32.xlu0 %v1177, 125
      %v1254 = vpop.permute.xlu0 %1253
      %1255 = vrot.lane.b32.xlu0 %v1178, 125
      %v1256 = vpop.permute.xlu0 %1255
      %vm1259 = vcmask 105472
      %1260 = vst.msk [vmem:[#allocation2 + $0x70] sm:$0xff] %vm1259, %v1254
      %1261 = vst.msk [vmem:[#allocation2 + $0x78] sm:$0xff] %vm1259, %v1256
      %1262 = vrot.lane.b32.xlu0 %v1177, 124
      %v1263 = vpop.permute.xlu0 %1262
      %1264 = vrot.lane.b32.xlu0 %v1178, 124
      %v1265 = vpop.permute.xlu0 %1264
      %vm1268 = vcmask 97280
      %1269 = vst.msk [vmem:[#allocation2 + $0x80] sm:$0xff] %vm1268, %v1263
      %1270 = vst.msk [vmem:[#allocation2 + $0x88] sm:$0xff] %vm1268, %v1265
      %v1271 = vld [vmem:[%s19] sm:$0xff]
      %v1272 = vld [vmem:[%s19 + $0x8] sm:$0xff]
      %v1273 = vld [vmem:[%s19 + $0x10] sm:$0xff]
      %v1274 = vld [vmem:[%s19 + $0x18] sm:$0xff]
      %v1275 = vld [vmem:[%s19 + $0x20] sm:$0xff]
      %v1276 = vld [vmem:[%s19 + $0x28] sm:$0xff]
      %v1277 = vld [vmem:[%s19 + $0x30] sm:$0xff]
      %v1278 = vld [vmem:[%s19 + $0x38] sm:$0xff]
      %v1279 = vld [vmem:[%s19 + $0x40] sm:$0xff]
      %v1280 = vld [vmem:[%s19 + $0x48] sm:$0xff]
      %v1281 = vld [vmem:[%s19 + $0x50] sm:$0xff]
      %v1282 = vld [vmem:[%s19 + $0x58] sm:$0xff]
      %v1283 = vld [vmem:[%s19 + $0x60] sm:$0xff]
      %v1284 = vld [vmem:[%s19 + $0x68] sm:$0xff]
      %v1285 = vld [vmem:[%s19 + $0x70] sm:$0xff]
      %v1286 = vld [vmem:[%s19 + $0x78] sm:$0xff]
      %v1287 = vld [vmem:[%s19 + $0x80] sm:$0xff]
      %v1288 = vld [vmem:[%s19 + $0x88] sm:$0xff]
      %v1289 = vld [vmem:[%s19 + $0x90] sm:$0xff]
      %v1290 = vld [vmem:[%s19 + $0x98] sm:$0xff]
      %v1291 = vld [vmem:[%s19 + $0xa0] sm:$0xff]
      %v1292 = vld [vmem:[%s19 + $0xa8] sm:$0xff]
      %v1293 = vld [vmem:[%s19 + $0xb0] sm:$0xff]
      %v1294 = vld [vmem:[%s19 + $0xb8] sm:$0xff]
      %v1295 = vld [vmem:[#allocation2] sm:$0xff]
      %v1296 = vld [vmem:[#allocation2 + $0x8] sm:$0xff]
      %v1297 = vld [vmem:[#allocation2 + $0x10] sm:$0xff]
      %v1298 = vld [vmem:[#allocation2 + $0x18] sm:$0xff]
      %v1299 = vld [vmem:[#allocation2 + $0x20] sm:$0xff]
      %v1300 = vld [vmem:[#allocation2 + $0x28] sm:$0xff]
      %v1301 = vld [vmem:[#allocation2 + $0x30] sm:$0xff]
      %v1302 = vld [vmem:[#allocation2 + $0x38] sm:$0xff]
      %v1303 = vld [vmem:[#allocation2 + $0x40] sm:$0xff]
      %v1304 = vld [vmem:[#allocation2 + $0x48] sm:$0xff]
      %v1305 = vld [vmem:[#allocation2 + $0x50] sm:$0xff]
      %v1306 = vld [vmem:[#allocation2 + $0x58] sm:$0xff]
      %v1307 = vld [vmem:[#allocation2 + $0x60] sm:$0xff]
      %v1308 = vld [vmem:[#allocation2 + $0x68] sm:$0xff]
      %v1309 = vld [vmem:[#allocation2 + $0x70] sm:$0xff]
      %v1310 = vld [vmem:[#allocation2 + $0x78] sm:$0xff]
      %v1311 = vld [vmem:[#allocation2 + $0x80] sm:$0xff]
      %v1312 = vld [vmem:[#allocation2 + $0x88] sm:$0xff]
      %v1314 = vsel %vm661, %v1272, 0
      %v1317 = vsel %vm661, %v1274, 0
      %v1320 = vsel %vm661, %v1276, 0
      %v1323 = vsel %vm661, %v1278, 0
      %v1326 = vsel %vm661, %v1280, 0
      %v1329 = vsel %vm661, %v1282, 0
      %v1332 = vsel %vm661, %v1284, 0
      %v1335 = vsel %vm661, %v1286, 0
      %v1338 = vsel %vm661, %v1288, 0
      %v1341 = vsel %vm661, %v1290, 0
      %v1344 = vsel %vm661, %v1292, 0
      %v1347 = vsel %vm661, %v1294, 0
      %1349 = vmatpush.msra.mxu0 %v1310
      %1350 = vmatpush.msra.mxu0 %v1309
      %1351 = vmatpush.msra.mxu0 %v1308
      %1352 = vmatpush.msra.mxu0 %v1307
      %1353 = vmatpush.msra.mxu0 %v1306
      %1354 = vmatpush.msra.mxu0 %v1305
      %1355 = vmatpush.msra.mxu0 %v1304
      %1356 = vmatpush.msra.mxu0 %v1303
      %1357 = vmatpush.msra.mxu0 %v1302
      %1358 = vmatpush.msra.mxu0 %v1301
      %1359 = vmatpush.msra.mxu0 %v1300
      %1360 = vmatpush.msra.mxu0 %v1299
      %1361 = vmatpush.msra.mxu0 %v1298
      %1362 = vmatpush.msra.mxu0 %v1297
      %1363 = vmatpush.msra.mxu0 %v1296
      %1364 = vmatpush.msra.mxu0 %v1295
      %1365 = vmatmul.f32.gmra.mxu0 %v1271
      %v1366 = vpop.f32.mrf.mxu0
      %v1367 = vadd.f32 0.0, %v1366
      %1368 = vmatmul.f32.gmra.mxu0 %v1273
      %v1369 = vpop.f32.mrf.mxu0
      %v1370 = vadd.f32 0.0, %v1369
      %1371 = vmatmul.f32.gmra.mxu0 %v1275
      %v1372 = vpop.f32.mrf.mxu0
      %v1373 = vadd.f32 0.0, %v1372
      %1374 = vmatmul.f32.gmra.mxu0 %v1277
      %v1375 = vpop.f32.mrf.mxu0
      %v1376 = vadd.f32 0.0, %v1375
      %1377 = vmatmul.f32.gmra.mxu0 %v1279
      %v1378 = vpop.f32.mrf.mxu0
      %v1379 = vadd.f32 0.0, %v1378
      %1380 = vmatmul.f32.gmra.mxu0 %v1281
      %v1381 = vpop.f32.mrf.mxu0
      %v1382 = vadd.f32 0.0, %v1381
      %1383 = vmatmul.f32.gmra.mxu0 %v1283
      %v1384 = vpop.f32.mrf.mxu0
      %v1385 = vadd.f32 0.0, %v1384
      %1386 = vmatmul.f32.gmra.mxu0 %v1285
      %v1387 = vpop.f32.mrf.mxu0
      %v1388 = vadd.f32 0.0, %v1387
      %1389 = vmatmul.f32.gmra.mxu0 %v1287
      %v1390 = vpop.f32.mrf.mxu0
      %v1391 = vadd.f32 0.0, %v1390
      %1392 = vmatmul.f32.gmra.mxu0 %v1289
      %v1393 = vpop.f32.mrf.mxu0
      %v1394 = vadd.f32 0.0, %v1393
      %1395 = vmatmul.f32.gmra.mxu0 %v1291
      %v1396 = vpop.f32.mrf.mxu0
      %v1397 = vadd.f32 0.0, %v1396
      %1398 = vmatmul.f32.gmra.mxu0 %v1293
      %v1399 = vpop.f32.mrf.mxu0
      %v1400 = vadd.f32 0.0, %v1399
      %1401 = vdwg.mxu0
      %1402 = vmatpush.msra.mxu0 0.0
      %1403 = vmatpush.msra.mxu0 0.0
      %1404 = vmatpush.msra.mxu0 0.0
      %1405 = vmatpush.msra.mxu0 0.0
      %1406 = vmatpush.msra.mxu0 0.0
      %1407 = vmatpush.msra.mxu0 0.0
      %1408 = vmatpush.msra.mxu0 0.0
      %1409 = vmatpush.msra.mxu0 0.0
      %1410 = vmatpush.msra.mxu0 0.0
      %1411 = vmatpush.msra.mxu0 0.0
      %1412 = vmatpush.msra.mxu0 0.0
      %1413 = vmatpush.msra.mxu0 0.0
      %1414 = vmatpush.msra.mxu0 0.0
      %1415 = vmatpush.msra.mxu0 0.0
      %1416 = vmatpush.msra.mxu0 %v1312
      %1417 = vmatpush.msra.mxu0 %v1311
      %1418 = vmatmul.f32.gmra.mxu0 %v1314
      %v1419 = vpop.f32.mrf.mxu0
      %v1420 = vadd.f32 %v1367, %v1419
      %1421 = vmatmul.f32.gmra.mxu0 %v1317
      %v1422 = vpop.f32.mrf.mxu0
      %v1423 = vadd.f32 %v1370, %v1422
      %1424 = vmatmul.f32.gmra.mxu0 %v1320
      %v1425 = vpop.f32.mrf.mxu0
      %v1426 = vadd.f32 %v1373, %v1425
      %1427 = vmatmul.f32.gmra.mxu0 %v1323
      %v1428 = vpop.f32.mrf.mxu0
      %v1429 = vadd.f32 %v1376, %v1428
      %1430 = vmatmul.f32.gmra.mxu0 %v1326
      %v1431 = vpop.f32.mrf.mxu0
      %v1432 = vadd.f32 %v1379, %v1431
      %1433 = vmatmul.f32.gmra.mxu0 %v1329
      %v1434 = vpop.f32.mrf.mxu0
      %v1435 = vadd.f32 %v1382, %v1434
      %1436 = vmatmul.f32.gmra.mxu0 %v1332
      %v1437 = vpop.f32.mrf.mxu0
      %v1438 = vadd.f32 %v1385, %v1437
      %1439 = vmatmul.f32.gmra.mxu0 %v1335
      %v1440 = vpop.f32.mrf.mxu0
      %v1441 = vadd.f32 %v1388, %v1440
      %1442 = vmatmul.f32.gmra.mxu0 %v1338
      %v1443 = vpop.f32.mrf.mxu0
      %v1444 = vadd.f32 %v1391, %v1443
      %1445 = vmatmul.f32.gmra.mxu0 %v1341
      %v1446 = vpop.f32.mrf.mxu0
      %v1447 = vadd.f32 %v1394, %v1446
      %1448 = vmatmul.f32.gmra.mxu0 %v1344
      %v1449 = vpop.f32.mrf.mxu0
      %v1450 = vadd.f32 %v1397, %v1449
      %1451 = vmatmul.f32.gmra.mxu0 %v1347
      %v1452 = vpop.f32.mrf.mxu0
      %v1453 = vadd.f32 %v1400, %v1452
      %1454 = vdwg.mxu0
      %v1455 = vmul.f32 %v1420, 0.999995
      %v1456 = vmul.f32 %v1423, 0.999995
      %v1457 = vmul.f32 %v1426, 0.999995
      %v1458 = vmul.f32 %v1429, 0.999995
      %v1459 = vmul.f32 %v1432, 0.999995
      %v1460 = vmul.f32 %v1435, 0.999995
      %v1461 = vmul.f32 %v1438, 0.999995
      %v1462 = vmul.f32 %v1441, 0.999995
      %v1463 = vmul.f32 %v1444, 0.999995
      %v1464 = vmul.f32 %v1447, 0.999995
      %v1465 = vmul.f32 %v1450, 0.999995
      %v1466 = vmul.f32 %v1453, 0.999995
      %v1467 = vmax.f32 %v1455, 0.0
      %v1468 = vmax.f32 %v1456, 0.0
      %v1469 = vmax.f32 %v1457, 0.0
      %v1470 = vmax.f32 %v1458, 0.0
      %v1471 = vmax.f32 %v1459, 0.0
      %v1472 = vmax.f32 %v1460, 0.0
      %v1473 = vmax.f32 %v1461, 0.0
      %v1474 = vmax.f32 %v1462, 0.0
      %v1475 = vmax.f32 %v1463, 0.0
      %v1476 = vmax.f32 %v1464, 0.0
      %v1477 = vmax.f32 %v1465, 0.0
      %v1478 = vmax.f32 %v1466, 0.0
      %v1479 = vld [vmem:[%s20] sm:$0xff]
      %v1480 = vld [vmem:[%s20 + $0x8] sm:$0xff]
      %v1481 = vld [vmem:[%s20 + $0x10] sm:$0xff]
      %v1482 = vld [vmem:[%s20 + $0x18] sm:$0xff]
      %vm1483 = vcmask 785408
      %v1485 = vsel %vm1483, %v1479, 0
      %v1488 = vsel %vm1483, %v1480, 0
      %v1491 = vsel %vm1483, %v1481, 0
      %v1494 = vsel %vm1483, %v1482, 0
      %1496 = vmatpush.msra.mxu0 0.0
      %1497 = vmatpush.msra.mxu0 0.0
      %1498 = vmatpush.msra.mxu0 0.0
      %1499 = vmatpush.msra.mxu0 0.0
      %1500 = vmatpush.msra.mxu0 %v1478
      %1501 = vmatpush.msra.mxu0 %v1477
      %1502 = vmatpush.msra.mxu0 %v1476
      %1503 = vmatpush.msra.mxu0 %v1475
      %1504 = vmatpush.msra.mxu0 %v1474
      %1505 = vmatpush.msra.mxu0 %v1473
      %1506 = vmatpush.msra.mxu0 %v1472
      %1507 = vmatpush.msra.mxu0 %v1471
      %1508 = vmatpush.msra.mxu0 %v1470
      %1509 = vmatpush.msra.mxu0 %v1469
      %1510 = vmatpush.msra.mxu0 %v1468
      %1511 = vmatpush.msra.mxu0 %v1467
      %1512 = vmatmul.f32.gmra.mxu0 %v1485
      %v1513 = vpop.f32.mrf.mxu0
      %v1514 = vadd.f32 0.0, %v1513
      %1515 = vmatmul.f32.gmra.mxu0 %v1488
      %v1516 = vpop.f32.mrf.mxu0
      %v1517 = vadd.f32 0.0, %v1516
      %1518 = vmatmul.f32.gmra.mxu0 %v1491
      %v1519 = vpop.f32.mrf.mxu0
      %v1520 = vadd.f32 0.0, %v1519
      %1521 = vmatmul.f32.gmra.mxu0 %v1494
      %v1522 = vpop.f32.mrf.mxu0
      %v1523 = vadd.f32 0.0, %v1522
      %1524 = vdwg.mxu0
      %1525 = vst.msk [vmem:[%s656] sm:$0xff] %vm661, %v1514
      %1526 = vst.msk [vmem:[%s656 + $0x8] sm:$0xff] %vm661, %v1517
      %1527 = vst.msk [vmem:[%s656 + $0x10] sm:$0xff] %vm661, %v1520
      %1528 = vst.msk [vmem:[%s656 + $0x18] sm:$0xff] %vm661, %v1523
      %p1529 = scmp.lt.s32.totalorder %s32, 1
      %s1530 = scalar_select %p1529, %s32, 1
      %s1531 = smul.addr %s1530, 4
      %s1532 = smul.addr %s1531, 8
      %s1533 = scalar_lea.vmem %s21, %s1532
      // Predicated region
      $region105: #{pssp_repr_forward.1} parent=103 // pred_check
        %p1534 = pneg %p496
      $region106: #{pssp_repr_forward.1} parent=103 // pred_check_branch
        %1536 = sbr.rel (%p1534) target = $region108
      $region107: #{pssp_repr_forward.1} parent=103 // pred_region
        _
      $region108: #{pssp_repr_forward.1} parent=103 // pred_fallthru
        _
    $region104: #{pssp_repr_forward.1} parent=5 // pred_fallthru
      _
    %p1537 = scmp.le.s32.totalorder 2, %s27
    // Predicated region
    $region109: #{pssp_repr_forward.1} parent=5 // pred_check
      %p1538 = pneg %p1537
    $region110: #{pssp_repr_forward.1} parent=5 // pred_check_branch
      %1540 = sbr.rel (%p1538) target = $region112
    $region111: #{pssp_repr_forward.1} parent=5 // pred_region
      %s1541 = ssub.s32 %s27, 2
      // Predicated region
      $region113: #{pssp_repr_forward.1} parent=111 // pred_check
        %p1542 = pneg %p502
      $region114: #{pssp_repr_forward.1} parent=111 // pred_check_branch
        %1544 = sbr.rel (%p1542) target = $region116
      $region115: #{pssp_repr_forward.1} parent=111 // pred_region
        %p1545 = scmp.lt.s32.totalorder %s33, 1
        %s1546 = scalar_select %p1545, %s33, 1
        %s1547 = smul.addr %s1546, 4
        %s1548 = smul.addr %s1547, 8
        %s1549 = scalar_lea.vmem %s21, %s1548
      $region116: #{pssp_repr_forward.1} parent=111 // pred_fallthru
        _
    $region112: #{pssp_repr_forward.1} parent=5 // pred_fallthru
      _
  $region6: #{pssp_repr_forward.1} parent=0 // loop_footer
    %s31 = sadd.s32 1, %s27
  $region7: #{pssp_repr_forward.1} parent=0 // loop_footer_branch
    %26 = sbr.rel target = $region3
  $region8: #{pssp_repr_forward.1} parent=0 // loop_exit
    _

</llo_original>
